<compile_context>
chip_gen: v7x
topology: tpu7x:2x2x1
jax: 0.10.0
libtpu: 0.0.40
codegen_flags: <defaults>
</compile_context>

<pallas_src>
import functools

import jax
import jax.numpy as jnp
from jax.experimental import pallas as pl
from jax.experimental.pallas import tpu as pltpu


# ---------------------------------------------------------------------------
# Kernel 1: QKV projection with batch folded into the matmul row dimension.
#   (B*N, C) @ (C, 3C)  — one dense MXU matmul per row tile, lane-dense output.
#   The attention scale is pre-folded into the Q columns of the weight.
# ---------------------------------------------------------------------------
def _qkv_proj_kernel(x_ref, w_ref, o_ref):
    # x_ref: (TM, C), w_ref: (C, 3C), o_ref: (TM, 3C)
    o_ref[...] = jnp.dot(x_ref[...], w_ref[...],
                         preferred_element_type=jnp.float32).astype(o_ref.dtype)


def _pick_row_tile(m):
    # MXU-friendly row tiles; fall back to a single full block for tiny demos.
    for t in (512, 256, 128):
        if m % t == 0:
            return t
    return m


# ---------------------------------------------------------------------------
# Kernel 2: head-batched attention + fused output projection, one batch/step.
#   q/k/v arrive already split per head (B, H, N, Dh); all matmuls are
#   head-batched dot_generals (no per-head Python loop, no lane slices, no
#   concat). The output projection contracts over (head, Dh) jointly, which is
#   the implicit concat-over-heads — no (H,N,Dh)->(N,C) relayout is needed.
# ---------------------------------------------------------------------------
def _mha_proj_kernel(q_ref, k_ref, v_ref, wp_ref, bp_ref, o_ref):
    # q/k/v_ref: (1, H, N, Dh); wp_ref: (H, Dh, C); bp_ref: (1, C); o_ref: (1, N, C)
    q = q_ref[0]                        # (H, N, Dh) — scale already folded into Wq
    k = k_ref[0]
    v = v_ref[0]

    # Head-batched scores: (H, N, N) in one batched MXU op.
    s = jax.lax.dot_general(q, k, (((2,), (2,)), ((0,), (0,))),
                            preferred_element_type=jnp.float32)

    # Numerically-stable softmax over the key axis; stats kept in f32.
    s = s - jnp.max(s, axis=-1, keepdims=True)
    p = jnp.exp(s)
    p = p * pl.reciprocal(jnp.sum(p, axis=-1, keepdims=True), approx=True)  # EUP vrcp
    # NOTE: attn_drop / proj_drop are identity (p=0.0 default / eval mode).
    # TODO(synk): for long sequences, tile the KV axis with online softmax
    # (flash-style) so the (H, N, N) score block stays within VMEM (v7x: 64 MiB).

    # Head-batched context: (H, N, Dh).
    ctx = jax.lax.dot_general(p.astype(v.dtype), v, (((2,), (1,)), ((0,), (0,))),
                              preferred_element_type=jnp.float32)

    # Fused output projection: per-head (N, Dh) @ (Dh, C), summed over heads.
    per_head = jax.lax.dot_general(ctx, wp_ref[...], (((2,), (1,)), ((0,), (0,))),
                                   preferred_element_type=jnp.float32)   # (H, N, C)
    out = jnp.sum(per_head, axis=0) + bp_ref[0]                          # (N, C)
    o_ref[0] = out.astype(o_ref.dtype)


@functools.partial(jax.jit, static_argnames=("num_heads",))
def attention_pallas(x, w_qkv, w_proj, b_proj, *, num_heads):
    """x: (B, N, C); w_qkv: (3C, C); w_proj: (C, C); b_proj: (C,)."""
    B, N, C = x.shape
    H = num_heads
    Dh = C // H
    scale = Dh ** (-0.5)

    # --- one-time (trace-time) weight re-layout; PyTorch Linear: y = x @ W.T + b
    wq, wk, wv = jnp.split(jnp.asarray(w_qkv), 3, axis=0)            # each (C, C)
    wqkv_t = jnp.concatenate([wq.T * scale, wk.T, wv.T], axis=1)     # (C, 3C), scale folded into Q
    wproj_r = jnp.asarray(w_proj).T.reshape(H, Dh, C)                # (H, Dh, C)
    bproj2d = jnp.asarray(b_proj).reshape(1, C)

    # --- stage 1: QKV projection, batch folded into rows ---------------------
    M = B * N
    tm = _pick_row_tile(M)
    x2d = x.reshape(M, C)
    qkv2d = pl.pallas_call(
        _qkv_proj_kernel,
        out_shape=jax.ShapeDtypeStruct((M, 3 * C), x.dtype),
        grid_spec=pltpu.PrefetchScalarGridSpec(
            num_scalar_prefetch=0,
            grid=(M // tm,),
            in_specs=[
                pl.BlockSpec((tm, C), lambda i: (i, 0)),
                pl.BlockSpec((C, 3 * C), lambda i: (0, 0)),
            ],
            out_specs=pl.BlockSpec((tm, 3 * C), lambda i: (i, 0)),
        ),
        compiler_params=pltpu.CompilerParams(
            dimension_semantics=("parallel",)),
    )(x2d, wqkv_t)

    # --- head split done once by XLA outside the kernel (no in-kernel slicing)
    qkv = qkv2d.reshape(B, N, 3, H, Dh).transpose(2, 0, 3, 1, 4)     # (3, B, H, N, Dh)
    q, k, v = qkv[0], qkv[1], qkv[2]

    # --- stage 2: head-batched attention + fused output projection -----------
    return pl.pallas_call(
        _mha_proj_kernel,
        out_shape=jax.ShapeDtypeStruct((B, N, C), x.dtype),
        grid_spec=pltpu.PrefetchScalarGridSpec(
            num_scalar_prefetch=0,
            grid=(B,),   # parallel batch axis -> both v7x TensorCores get work
            in_specs=[
                pl.BlockSpec((1, H, N, Dh), lambda b: (b, 0, 0, 0)),
                pl.BlockSpec((1, H, N, Dh), lambda b: (b, 0, 0, 0)),
                pl.BlockSpec((1, H, N, Dh), lambda b: (b, 0, 0, 0)),
                pl.BlockSpec((H, Dh, C), lambda b: (0, 0, 0)),
                pl.BlockSpec((1, C), lambda b: (0, 0)),
            ],
            out_specs=pl.BlockSpec((1, N, C), lambda b: (b, 0, 0)),
        ),
        compiler_params=pltpu.CompilerParams(
            dimension_semantics=("parallel",)),
    )(q, k, v, wproj_r, bproj2d)


def attention_ref(x, w_qkv, w_proj, b_proj, *, num_heads):
    """Pure-JAX reference mirroring the PyTorch forward."""
    B, N, C = x.shape
    head_dim = C // num_heads
    scale = head_dim ** (-0.5)
    qkv = x @ w_qkv.T                                         # (B, N, 3C), qkv_bias=False
    qkv = qkv.reshape(B, N, 3, num_heads, head_dim).transpose(2, 0, 3, 1, 4)
    q, k, v = qkv[0], qkv[1], qkv[2]                          # (B, H, N, Dh)
    attn = jnp.einsum("bhnd,bhmd->bhnm", q, k) * scale
    attn = jax.nn.softmax(attn, axis=-1)
    out = jnp.einsum("bhnm,bhmd->bhnd", attn, v)              # (B, H, N, Dh)
    out = out.transpose(0, 2, 1, 3).reshape(B, N, C)
    return out @ w_proj.T + b_proj


if __name__ == "__main__":
    # Small shapes consistent with the module: dim=128, num_heads=8 (Dh=16),
    # seq=16, batch=2. dim=128 keeps the output lane-dense (multiple of 128).
    B, N, C, H = 2, 16, 128, 8
    key = jax.random.PRNGKey(0)
    k_x, k_wqkv, k_wproj, k_bproj = jax.random.split(key, 4)

    x = jax.random.normal(k_x, (B, N, C), dtype=jnp.float32)
    # Deterministic synthetic parameters (qkv_bias=False -> no qkv bias).
    w_qkv = jax.random.normal(k_wqkv, (3 * C, C), dtype=jnp.float32) * 0.05
    w_proj = jax.random.normal(k_wproj, (C, C), dtype=jnp.float32) * 0.05
    b_proj = jax.random.normal(k_bproj, (C,), dtype=jnp.float32) * 0.05

    out = attention_pallas(x, w_qkv, w_proj, b_proj, num_heads=H)
    out = jax.block_until_ready(out)

    ref = attention_ref(x, w_qkv, w_proj, b_proj, num_heads=H)
    assert out.shape == (B, N, C)
    # Tolerance accounts for pl.reciprocal(approx=True) in the softmax denominator
    # (~2e-4 relative) plus f32 matmul re-association from the fused head layout.
    assert jnp.allclose(out, ref, atol=2e-3, rtol=2e-3), "mismatch vs reference"

    print("KERNEL_OK")
</pallas_src>

<mosaic_0001>
module attributes {stable_mosaic.version = 11 : i64} {
  func.func @_qkv_proj_kernel(%arg0: i32, %arg1: memref<32x128xf32, #tpu.memory_space<vmem>>, %arg2: memref<128x384xf32, #tpu.memory_space<vmem>>, %arg3: memref<32x384xf32, #tpu.memory_space<vmem>>) attributes {dimension_semantics = [#tpu.dimension_semantics<parallel>], iteration_bounds = array<i64: 1>, scalar_prefetch = 0 : i64, scratch_operands = 0 : i64, tpu.core_type = #tpu.core_type<tc>, window_params = [{transform_indices = @transform_0, window_bounds = array<i64: 32, 128>}, {pipeline_mode = #tpu.pipeline_mode<synchronous>, transform_indices = @transform_1, window_bounds = array<i64: 128, 384>}, {transform_indices = @transform_2, window_bounds = array<i64: 32, 384>}]} {
    %c0 = arith.constant 0 : index
    %c0_0 = arith.constant 0 : index
    %0 = vector.load %arg1[%c0, %c0_0] : memref<32x128xf32, #tpu.memory_space<vmem>>, vector<32x128xf32>
    %c0_1 = arith.constant 0 : index
    %c0_2 = arith.constant 0 : index
    %1 = vector.load %arg2[%c0_1, %c0_2] : memref<128x384xf32, #tpu.memory_space<vmem>>, vector<128x384xf32>
    %cst = arith.constant dense<0.000000e+00> : vector<32x384xf32>
    %2 = tpu.matmul %0, %1, %cst {dimension_numbers = #tpu.dot_dimension_numbers<[1], [0], [0], [1], [0, 0, 1, 1], [], []>} : vector<32x128xf32>, vector<128x384xf32>, vector<32x384xf32> -> vector<32x384xf32>
    %c0_3 = arith.constant 0 : index
    %c0_4 = arith.constant 0 : index
    %3 = vector.load %arg3[%c0_3, %c0_4] : memref<32x384xf32, #tpu.memory_space<vmem>>, vector<32x384xf32>
    tpu.vector_store %arg3[%c0_3, %c0_4], %2 {strides = array<i32>} : memref<32x384xf32, #tpu.memory_space<vmem>>, vector<32x384xf32>,
    return
  }
  func.func @transform_0(%arg0: i32) -> (i32, i32) {
    %c0_i32 = arith.constant 0 : i32
    %c0_i32_0 = arith.constant 0 : i32
    return %arg0, %c0_i32 : i32, i32
  }
  func.func @transform_1(%arg0: i32) -> (i32, i32) {
    %c0_i32 = arith.constant 0 : i32
    %c0_i32_0 = arith.constant 0 : i32
    %c0_i32_1 = arith.constant 0 : i32
    return %c0_i32, %c0_i32_0 : i32, i32
  }
  func.func @transform_2(%arg0: i32) -> (i32, i32) {
    %c0_i32 = arith.constant 0 : i32
    %c0_i32_0 = arith.constant 0 : i32
    return %arg0, %c0_i32 : i32, i32
  }
}

module attributes {stable_mosaic.version = 11 : i64} {
  func.func @_mha_proj_kernel(%arg0: i32, %arg1: memref<1x8x16x16xf32, #tpu.memory_space<vmem>>, %arg2: memref<1x8x16x16xf32, #tpu.memory_space<vmem>>, %arg3: memref<1x8x16x16xf32, #tpu.memory_space<vmem>>, %arg4: memref<8x16x128xf32, #tpu.memory_space<vmem>>, %arg5: memref<1x128xf32, #tpu.memory_space<vmem>>, %arg6: memref<1x16x128xf32, #tpu.memory_space<vmem>>) attributes {dimension_semantics = [#tpu.dimension_semantics<parallel>], iteration_bounds = array<i64: 2>, scalar_prefetch = 0 : i64, scratch_operands = 0 : i64, tpu.core_type = #tpu.core_type<tc>, window_params = [{transform_indices = @transform_0, window_bounds = array<i64: 1, 8, 16, 16>}, {transform_indices = @transform_1, window_bounds = array<i64: 1, 8, 16, 16>}, {transform_indices = @transform_2, window_bounds = array<i64: 1, 8, 16, 16>}, {pipeline_mode = #tpu.pipeline_mode<synchronous>, transform_indices = @transform_3, window_bounds = array<i64: 8, 16, 128>}, {pipeline_mode = #tpu.pipeline_mode<synchronous>, transform_indices = @transform_4, window_bounds = array<i64: 1, 128>}, {transform_indices = @transform_5, window_bounds = array<i64: 1, 16, 128>}]} {
    %c0 = arith.constant 0 : index
    %c0_0 = arith.constant 0 : index
    %c0_1 = arith.constant 0 : index
    %c0_2 = arith.constant 0 : index
    %0 = vector.load %arg1[%c0, %c0_0, %c0_1, %c0_2] : memref<1x8x16x16xf32, #tpu.memory_space<vmem>>, vector<1x8x16x16xf32>
    %1 = vector.shape_cast %0 : vector<1x8x16x16xf32> to vector<8x16x16xf32>
    %c0_3 = arith.constant 0 : index
    %c0_4 = arith.constant 0 : index
    %c0_5 = arith.constant 0 : index
    %c0_6 = arith.constant 0 : index
    %2 = vector.load %arg2[%c0_3, %c0_4, %c0_5, %c0_6] : memref<1x8x16x16xf32, #tpu.memory_space<vmem>>, vector<1x8x16x16xf32>
    %3 = vector.shape_cast %2 : vector<1x8x16x16xf32> to vector<8x16x16xf32>
    %c0_7 = arith.constant 0 : index
    %c0_8 = arith.constant 0 : index
    %c0_9 = arith.constant 0 : index
    %c0_10 = arith.constant 0 : index
    %4 = vector.load %arg3[%c0_7, %c0_8, %c0_9, %c0_10] : memref<1x8x16x16xf32, #tpu.memory_space<vmem>>, vector<1x8x16x16xf32>
    %5 = vector.shape_cast %4 : vector<1x8x16x16xf32> to vector<8x16x16xf32>
    %cst = arith.constant dense<0.000000e+00> : vector<8x16x16xf32>
    %6 = tpu.matmul %1, %3, %cst {dimension_numbers = #tpu.dot_dimension_numbers<[2], [2], [1], [1], [0, 0, 0, 1, 1, 1], [0], [0]>} : vector<8x16x16xf32>, vector<8x16x16xf32>, vector<8x16x16xf32> -> vector<8x16x16xf32>
    %cst_11 = arith.constant dense<0xFF800000> : vector<8x16xf32>
    %7 = vector.multi_reduction <maximumf>, %6, %cst_11 [2] : vector<8x16x16xf32> to vector<8x16xf32>
    %8 = vector.shape_cast %7 : vector<8x16xf32> to vector<8x16x1xf32>
    %9 = vector.broadcast %8 : vector<8x16x1xf32> to vector<8x16x16xf32>
    %10 = arith.subf %6, %9 : vector<8x16x16xf32>
    %11 = math.exp %10 : vector<8x16x16xf32>
    %cst_12 = arith.constant dense<0.000000e+00> : vector<8x16xf32>
    %12 = vector.multi_reduction <add>, %11, %cst_12 [2] : vector<8x16x16xf32> to vector<8x16xf32>
    %13 = vector.shape_cast %12 : vector<8x16xf32> to vector<8x16x1xf32>
    %14 = tpu.reciprocal %13 {approx = true} : vector<8x16x1xf32> -> vector<8x16x1xf32>
    %15 = vector.broadcast %14 : vector<8x16x1xf32> to vector<8x16x16xf32>
    %16 = arith.mulf %11, %15 : vector<8x16x16xf32>
    %cst_13 = arith.constant dense<0.000000e+00> : vector<8x16x16xf32>
    %17 = tpu.matmul %16, %5, %cst_13 {dimension_numbers = #tpu.dot_dimension_numbers<[2], [1], [1], [2], [0, 0, 0, 1, 1, 2], [0], [0]>} : vector<8x16x16xf32>, vector<8x16x16xf32>, vector<8x16x16xf32> -> vector<8x16x16xf32>
    %c0_14 = arith.constant 0 : index
    %c0_15 = arith.constant 0 : index
    %c0_16 = arith.constant 0 : index
    %18 = vector.load %arg4[%c0_14, %c0_15, %c0_16] : memref<8x16x128xf32, #tpu.memory_space<vmem>>, vector<8x16x128xf32>
    %cst_17 = arith.constant dense<0.000000e+00> : vector<8x16x128xf32>
    %19 = tpu.matmul %17, %18, %cst_17 {dimension_numbers = #tpu.dot_dimension_numbers<[2], [1], [1], [2], [0, 0, 0, 1, 1, 2], [0], [0]>} : vector<8x16x16xf32>, vector<8x16x128xf32>, vector<8x16x128xf32> -> vector<8x16x128xf32>
    %cst_18 = arith.constant dense<0.000000e+00> : vector<16x128xf32>
    %20 = vector.multi_reduction <add>, %19, %cst_18 [0] : vector<8x16x128xf32> to vector<16x128xf32>
    %c0_19 = arith.constant 0 : index
    %c0_20 = arith.constant 0 : index
    %21 = vector.load %arg5[%c0_19, %c0_20] : memref<1x128xf32, #tpu.memory_space<vmem>>, vector<1x128xf32>
    %22 = vector.shape_cast %21 : vector<1x128xf32> to vector<128xf32>
    %23 = vector.shape_cast %22 : vector<128xf32> to vector<1x128xf32>
    %24 = vector.broadcast %23 : vector<1x128xf32> to vector<16x128xf32>
    %25 = arith.addf %20, %24 : vector<16x128xf32>
    %c0_21 = arith.constant 0 : index
    %c0_22 = arith.constant 0 : index
    %c0_23 = arith.constant 0 : index
    %26 = vector.load %arg6[%c0_21, %c0_22, %c0_23] : memref<1x16x128xf32, #tpu.memory_space<vmem>>, vector<1x16x128xf32>
    %27 = vector.shape_cast %26 : vector<1x16x128xf32> to vector<16x128xf32>
    %28 = vector.shape_cast %25 : vector<16x128xf32> to vector<1x16x128xf32>
    tpu.vector_store %arg6[%c0_21, %c0_22, %c0_23], %28 {strides = array<i32>} : memref<1x16x128xf32, #tpu.memory_space<vmem>>, vector<1x16x128xf32>,
    return
  }
  func.func @transform_0(%arg0: i32) -> (i32, i32, i32, i32) {
    %c0_i32 = arith.constant 0 : i32
    %c0_i32_0 = arith.constant 0 : i32
    %c0_i32_1 = arith.constant 0 : i32
    %c0_i32_2 = arith.constant 0 : i32
    return %arg0, %c0_i32, %c0_i32_0, %c0_i32_1 : i32, i32, i32, i32
  }
  func.func @transform_1(%arg0: i32) -> (i32, i32, i32, i32) {
    %c0_i32 = arith.constant 0 : i32
    %c0_i32_0 = arith.constant 0 : i32
    %c0_i32_1 = arith.constant 0 : i32
    %c0_i32_2 = arith.constant 0 : i32
    return %arg0, %c0_i32, %c0_i32_0, %c0_i32_1 : i32, i32, i32, i32
  }
  func.func @transform_2(%arg0: i32) -> (i32, i32, i32, i32) {
    %c0_i32 = arith.constant 0 : i32
    %c0_i32_0 = arith.constant 0 : i32
    %c0_i32_1 = arith.constant 0 : i32
    %c0_i32_2 = arith.constant 0 : i32
    return %arg0, %c0_i32, %c0_i32_0, %c0_i32_1 : i32, i32, i32, i32
  }
  func.func @transform_3(%arg0: i32) -> (i32, i32, i32) {
    %c0_i32 = arith.constant 0 : i32
    %c0_i32_0 = arith.constant 0 : i32
    %c0_i32_1 = arith.constant 0 : i32
    %c0_i32_2 = arith.constant 0 : i32
    return %c0_i32, %c0_i32_0, %c0_i32_1 : i32, i32, i32
  }
  func.func @transform_4(%arg0: i32) -> (i32, i32) {
    %c0_i32 = arith.constant 0 : i32
    %c0_i32_0 = arith.constant 0 : i32
    %c0_i32_1 = arith.constant 0 : i32
    return %c0_i32, %c0_i32_0 : i32, i32
  }
  func.func @transform_5(%arg0: i32) -> (i32, i32, i32) {
    %c0_i32 = arith.constant 0 : i32
    %c0_i32_0 = arith.constant 0 : i32
    %c0_i32_1 = arith.constant 0 : i32
    return %arg0, %c0_i32, %c0_i32_0 : i32, i32, i32
  }
}

</mosaic_0001>

<llo_original>
// kernel: attention_pallas.2
$region0: #{attention_pallas.2}
  #allocation0 [shape = 'u32[]', space=smem, size = 0x4, offset = 0x4, fixed_abs, tag = 'smem constant byte address 0x4 - core index']
  #allocation1 [shape = 'u32[144,128]{1,0:T(1,128)}', space=vmem, size = 0x12000, scoped, tag = 'internal scratch']
  %s0 = inlined_call_operand.vmem [shape: f32[32,128], index: 0, kind: input, shape index: {}]
  %s1 = inlined_call_operand.vmem [shape: f32[128,384], index: 1, kind: input, shape index: {}]
  %s2 = inlined_call_operand.vmem [shape: f32[32,384], index: 2, kind: output, shape index: {}]
  %s3 = sld [smem:[#allocation0]]
  $region18: #{attention_pallas.2} parent=0
    _
  %s5 = ssub.s32 1, %s3
  %s6 = scalar_select 0, %s5, %s3
  // Predicated region
  $region2: #{attention_pallas.2} parent=0 // pred_check
    _
  $region3: #{attention_pallas.2} parent=0 // pred_check_branch
    %8 = sbr.rel (0) target = $region5
  $region4: #{attention_pallas.2} parent=0 // pred_region
    _
  $region5: #{attention_pallas.2} parent=0 // pred_fallthru
    _
  // Predicated region
  $region6: #{attention_pallas.2} parent=0 // pred_check
    _
  $region7: #{attention_pallas.2} parent=0 // pred_check_branch
    %10 = sbr.rel (0) target = $region9
  $region8: #{attention_pallas.2} parent=0 // pred_region
    _
  $region9: #{attention_pallas.2} parent=0 // pred_fallthru
    _
  %v11 = vld [vmem:[%s0] sm:$0xff]
  %v12 = vld [vmem:[%s0 + $0x8] sm:$0xff]
  %v13 = vld [vmem:[%s0 + $0x10] sm:$0xff]
  %v14 = vld [vmem:[%s0 + $0x18] sm:$0xff]
  %v15 = vld [vmem:[%s1] sm:$0xff]
  %v16 = vld [vmem:[%s1 + $0x8] sm:$0xff]
  %v17 = vld [vmem:[%s1 + $0x10] sm:$0xff]
  %v18 = vld [vmem:[%s1 + $0x18] sm:$0xff]
  %v19 = vld [vmem:[%s1 + $0x20] sm:$0xff]
  %v20 = vld [vmem:[%s1 + $0x28] sm:$0xff]
  %v21 = vld [vmem:[%s1 + $0x30] sm:$0xff]
  %v22 = vld [vmem:[%s1 + $0x38] sm:$0xff]
  %v23 = vld [vmem:[%s1 + $0x40] sm:$0xff]
  %v24 = vld [vmem:[%s1 + $0x48] sm:$0xff]
  %v25 = vld [vmem:[%s1 + $0x50] sm:$0xff]
  %v26 = vld [vmem:[%s1 + $0x58] sm:$0xff]
  %v27 = vld [vmem:[%s1 + $0x60] sm:$0xff]
  %v28 = vld [vmem:[%s1 + $0x68] sm:$0xff]
  %v29 = vld [vmem:[%s1 + $0x70] sm:$0xff]
  %v30 = vld [vmem:[%s1 + $0x78] sm:$0xff]
  %v31 = vld [vmem:[%s1 + $0x80] sm:$0xff]
  %v32 = vld [vmem:[%s1 + $0x88] sm:$0xff]
  %v33 = vld [vmem:[%s1 + $0x90] sm:$0xff]
  %v34 = vld [vmem:[%s1 + $0x98] sm:$0xff]
  %v35 = vld [vmem:[%s1 + $0xa0] sm:$0xff]
  %v36 = vld [vmem:[%s1 + $0xa8] sm:$0xff]
  %v37 = vld [vmem:[%s1 + $0xb0] sm:$0xff]
  %v38 = vld [vmem:[%s1 + $0xb8] sm:$0xff]
  %v39 = vld [vmem:[%s1 + $0xc0] sm:$0xff]
  %v40 = vld [vmem:[%s1 + $0xc8] sm:$0xff]
  %v41 = vld [vmem:[%s1 + $0xd0] sm:$0xff]
  %v42 = vld [vmem:[%s1 + $0xd8] sm:$0xff]
  %v43 = vld [vmem:[%s1 + $0xe0] sm:$0xff]
  %v44 = vld [vmem:[%s1 + $0xe8] sm:$0xff]
  %v45 = vld [vmem:[%s1 + $0xf0] sm:$0xff]
  %v46 = vld [vmem:[%s1 + $0xf8] sm:$0xff]
  %v47 = vld [vmem:[%s1 + $0x100] sm:$0xff]
  %v48 = vld [vmem:[%s1 + $0x108] sm:$0xff]
  %v49 = vld [vmem:[%s1 + $0x110] sm:$0xff]
  %v50 = vld [vmem:[%s1 + $0x118] sm:$0xff]
  %v51 = vld [vmem:[%s1 + $0x120] sm:$0xff]
  %v52 = vld [vmem:[%s1 + $0x128] sm:$0xff]
  %v53 = vld [vmem:[%s1 + $0x130] sm:$0xff]
  %v54 = vld [vmem:[%s1 + $0x138] sm:$0xff]
  %v55 = vld [vmem:[%s1 + $0x140] sm:$0xff]
  %v56 = vld [vmem:[%s1 + $0x148] sm:$0xff]
  %v57 = vld [vmem:[%s1 + $0x150] sm:$0xff]
  %v58 = vld [vmem:[%s1 + $0x158] sm:$0xff]
  %v59 = vld [vmem:[%s1 + $0x160] sm:$0xff]
  %v60 = vld [vmem:[%s1 + $0x168] sm:$0xff]
  %v61 = vld [vmem:[%s1 + $0x170] sm:$0xff]
  %v62 = vld [vmem:[%s1 + $0x178] sm:$0xff]
  %63 = vmatprep.subr.mxu0 %v16
  %64 = vmatpush1.msra.mxu0 %v15
  %65 = vmatprep.subr.mxu0 %v19
  %66 = vmatpush1.msra.mxu0 %v18
  %67 = vmatprep.subr.mxu0 %v22
  %68 = vmatpush1.msra.mxu0 %v21
  %69 = vmatprep.subr.mxu0 %v25
  %70 = vmatpush1.msra.mxu0 %v24
  %71 = vmatprep.subr.mxu0 %v28
  %72 = vmatpush1.msra.mxu0 %v27
  %73 = vmatprep.subr.mxu0 %v31
  %74 = vmatpush1.msra.mxu0 %v30
  %75 = vmatprep.subr.mxu0 %v34
  %76 = vmatpush1.msra.mxu0 %v33
  %77 = vmatprep.subr.mxu0 %v37
  %78 = vmatpush1.msra.mxu0 %v36
  %79 = vmatprep.subr.mxu0 %v40
  %80 = vmatpush1.msra.mxu0 %v39
  %81 = vmatprep.subr.mxu0 %v43
  %82 = vmatpush1.msra.mxu0 %v42
  %83 = vmatprep.subr.mxu0 %v46
  %84 = vmatpush1.msra.mxu0 %v45
  %85 = vmatprep.subr.mxu0 %v49
  %86 = vmatpush1.msra.mxu0 %v48
  %87 = vmatprep.subr.mxu0 %v52
  %88 = vmatpush1.msra.mxu0 %v51
  %89 = vmatprep.subr.mxu0 %v55
  %90 = vmatpush1.msra.mxu0 %v54
  %91 = vmatprep.subr.mxu0 %v58
  %92 = vmatpush1.msra.mxu0 %v57
  %93 = vmatprep.subr.mxu0 %v61
  %94 = vmatpush1.msra.mxu0 %v60
  %95 = vmatprep.subr.mxu0 0.0
  %96 = vmatpush1.msra.mxu0 0.0
  %97 = vmatprep.subr.mxu0 0.0
  %98 = vmatpush1.msra.mxu0 0.0
  %99 = vmatprep.subr.mxu0 0.0
  %100 = vmatpush1.msra.mxu0 0.0
  %101 = vmatprep.subr.mxu0 0.0
  %102 = vmatpush1.msra.mxu0 0.0
  %103 = vmatprep.subr.mxu0 0.0
  %104 = vmatpush1.msra.mxu0 0.0
  %105 = vmatprep.subr.mxu0 0.0
  %106 = vmatpush1.msra.mxu0 0.0
  %107 = vmatprep.subr.mxu0 0.0
  %108 = vmatpush1.msra.mxu0 0.0
  %109 = vmatprep.subr.mxu0 0.0
  %110 = vmatpush1.msra.mxu0 0.0
  %111 = vmatprep.subr.mxu0 0.0
  %112 = vmatpush1.msra.mxu0 0.0
  %113 = vmatprep.subr.mxu0 0.0
  %114 = vmatpush1.msra.mxu0 0.0
  %115 = vmatprep.subr.mxu0 0.0
  %116 = vmatpush1.msra.mxu0 0.0
  %117 = vmatprep.subr.mxu0 0.0
  %118 = vmatpush1.msra.mxu0 0.0
  %119 = vmatprep.subr.mxu0 0.0
  %120 = vmatpush1.msra.mxu0 0.0
  %121 = vmatprep.subr.mxu0 0.0
  %122 = vmatpush1.msra.mxu0 0.0
  %123 = vmatprep.subr.mxu0 0.0
  %124 = vmatpush1.msra.mxu0 0.0
  %125 = vmatprep.subr.mxu0 0.0
  %126 = vmatpush1.msra.mxu0 0.0
  %127 = vmatprep.mubr.f32.mxu0 0.0
  %128 = vmatmul.mubr.f32.gmra.mrb[0].mxu0 %v11
  %v129 = vpop.f32.mrb[0].mxu0
  %v130 = vadd.f32 0.0, %v129
  %v131 = vpop.f32.mrb[0].mxu0
  %v132 = vadd.f32 0.0, %v131
  %133 = vmatprep.mubr.f32.mxu0 0.0
  %134 = vmatmul.mubr.f32.gmra.mrb[0].mxu0 %v12
  %v135 = vpop.f32.mrb[0].mxu0
  %v136 = vadd.f32 0.0, %v135
  %v137 = vpop.f32.mrb[0].mxu0
  %v138 = vadd.f32 0.0, %v137
  %139 = vmatprep.mubr.f32.mxu0 0.0
  %140 = vmatmul.mubr.f32.gmra.mrb[0].mxu0 %v13
  %v141 = vpop.f32.mrb[0].mxu0
  %v142 = vadd.f32 0.0, %v141
  %v143 = vpop.f32.mrb[0].mxu0
  %v144 = vadd.f32 0.0, %v143
  %145 = vmatprep.mubr.f32.mxu0 0.0
  %146 = vmatmul.mubr.f32.gmra.mrb[0].mxu0 %v14
  %v147 = vpop.f32.mrb[0].mxu0
  %v148 = vadd.f32 0.0, %v147
  %v149 = vpop.f32.mrb[0].mxu0
  %v150 = vadd.f32 0.0, %v149
  %151 = vdwg.mxu0
  %152 = vmatprep.subr.mxu0 0.0
  %153 = vmatpush1.msra.mxu0 %v17
  %154 = vmatprep.subr.mxu0 0.0
  %155 = vmatpush1.msra.mxu0 %v20
  %156 = vmatprep.subr.mxu0 0.0
  %157 = vmatpush1.msra.mxu0 %v23
  %158 = vmatprep.subr.mxu0 0.0
  %159 = vmatpush1.msra.mxu0 %v26
  %160 = vmatprep.subr.mxu0 0.0
  %161 = vmatpush1.msra.mxu0 %v29
  %162 = vmatprep.subr.mxu0 0.0
  %163 = vmatpush1.msra.mxu0 %v32
  %164 = vmatprep.subr.mxu0 0.0
  %165 = vmatpush1.msra.mxu0 %v35
  %166 = vmatprep.subr.mxu0 0.0
  %167 = vmatpush1.msra.mxu0 %v38
  %168 = vmatprep.subr.mxu0 0.0
  %169 = vmatpush1.msra.mxu0 %v41
  %170 = vmatprep.subr.mxu0 0.0
  %171 = vmatpush1.msra.mxu0 %v44
  %172 = vmatprep.subr.mxu0 0.0
  %173 = vmatpush1.msra.mxu0 %v47
  %174 = vmatprep.subr.mxu0 0.0
  %175 = vmatpush1.msra.mxu0 %v50
  %176 = vmatprep.subr.mxu0 0.0
  %177 = vmatpush1.msra.mxu0 %v53
  %178 = vmatprep.subr.mxu0 0.0
  %179 = vmatpush1.msra.mxu0 %v56
  %180 = vmatprep.subr.mxu0 0.0
  %181 = vmatpush1.msra.mxu0 %v59
  %182 = vmatprep.subr.mxu0 0.0
  %183 = vmatpush1.msra.mxu0 %v62
  %184 = vmatprep.subr.mxu0 0.0
  %185 = vmatpush1.msra.mxu0 0.0
  %186 = vmatprep.subr.mxu0 0.0
  %187 = vmatpush1.msra.mxu0 0.0
  %188 = vmatprep.subr.mxu0 0.0
  %189 = vmatpush1.msra.mxu0 0.0
  %190 = vmatprep.subr.mxu0 0.0
  %191 = vmatpush1.msra.mxu0 0.0
  %192 = vmatprep.subr.mxu0 0.0
  %193 = vmatpush1.msra.mxu0 0.0
  %194 = vmatprep.subr.mxu0 0.0
  %195 = vmatpush1.msra.mxu0 0.0
  %196 = vmatprep.subr.mxu0 0.0
  %197 = vmatpush1.msra.mxu0 0.0
  %198 = vmatprep.subr.mxu0 0.0
  %199 = vmatpush1.msra.mxu0 0.0
  %200 = vmatprep.subr.mxu0 0.0
  %201 = vmatpush1.msra.mxu0 0.0
  %202 = vmatprep.subr.mxu0 0.0
  %203 = vmatpush1.msra.mxu0 0.0
  %204 = vmatprep.subr.mxu0 0.0
  %205 = vmatpush1.msra.mxu0 0.0
  %206 = vmatprep.subr.mxu0 0.0
  %207 = vmatpush1.msra.mxu0 0.0
  %208 = vmatprep.subr.mxu0 0.0
  %209 = vmatpush1.msra.mxu0 0.0
  %210 = vmatprep.subr.mxu0 0.0
  %211 = vmatpush1.msra.mxu0 0.0
  %212 = vmatprep.subr.mxu0 0.0
  %213 = vmatpush1.msra.mxu0 0.0
  %214 = vmatprep.subr.mxu0 0.0
  %215 = vmatpush1.msra.mxu0 0.0
  %216 = vmatprep.mubr.f32.mxu0 0.0
  %217 = vmatmul.mubr.f32.gmra.mrb[0].mxu0 %v11
  %v218 = vpop.f32.mrb[0].mxu0
  %v219 = vadd.f32 0.0, %v218
  %v220 = vpop.f32.mrb[0].mxu0
  %221 = vmatprep.mubr.f32.mxu0 0.0
  %222 = vmatmul.mubr.f32.gmra.mrb[0].mxu0 %v12
  %v223 = vpop.f32.mrb[0].mxu0
  %v224 = vadd.f32 0.0, %v223
  %v225 = vpop.f32.mrb[0].mxu0
  %226 = vmatprep.mubr.f32.mxu0 0.0
  %227 = vmatmul.mubr.f32.gmra.mrb[0].mxu0 %v13
  %v228 = vpop.f32.mrb[0].mxu0
  %v229 = vadd.f32 0.0, %v228
  %v230 = vpop.f32.mrb[0].mxu0
  %231 = vmatprep.mubr.f32.mxu0 0.0
  %232 = vmatmul.mubr.f32.gmra.mrb[0].mxu0 %v14
  %v233 = vpop.f32.mrb[0].mxu0
  %v234 = vadd.f32 0.0, %v233
  %v235 = vpop.f32.mrb[0].mxu0
  %236 = vdwg.mxu0
  %237 = vst [vmem:[%s2] sm:$0xff] %v130
  %238 = vst [vmem:[%s2 + $0x8] sm:$0xff] %v132
  %239 = vst [vmem:[%s2 + $0x10] sm:$0xff] %v219
  %240 = vst [vmem:[%s2 + $0x18] sm:$0xff] %v136
  %241 = vst [vmem:[%s2 + $0x20] sm:$0xff] %v138
  %242 = vst [vmem:[%s2 + $0x28] sm:$0xff] %v224
  %243 = vst [vmem:[%s2 + $0x30] sm:$0xff] %v142
  %244 = vst [vmem:[%s2 + $0x38] sm:$0xff] %v144
  %245 = vst [vmem:[%s2 + $0x40] sm:$0xff] %v229
  %246 = vst [vmem:[%s2 + $0x48] sm:$0xff] %v148
  %247 = vst [vmem:[%s2 + $0x50] sm:$0xff] %v150
  %248 = vst [vmem:[%s2 + $0x58] sm:$0xff] %v234
  // Predicated region
  $region10: #{attention_pallas.2} parent=0 // pred_check
    _
  $region11: #{attention_pallas.2} parent=0 // pred_check_branch
    %250 = sbr.rel (0) target = $region13
  $region12: #{attention_pallas.2} parent=0 // pred_region
    _
  $region13: #{attention_pallas.2} parent=0 // pred_fallthru
    _
  // Predicated region
  $region14: #{attention_pallas.2} parent=0 // pred_check
    _
  $region15: #{attention_pallas.2} parent=0 // pred_check_branch
    %252 = sbr.rel (0) target = $region17
  $region16: #{attention_pallas.2} parent=0 // pred_region
    _
  $region17: #{attention_pallas.2} parent=0 // pred_fallthru
    _

// kernel: attention_pallas.3
$region0: #{attention_pallas.3}
  #allocation0 [shape = 'u32[]', space=smem, size = 0x4, offset = 0x4, fixed_abs, tag = 'smem constant byte address 0x4 - core index']
  #allocation1 [shape = 'u32[144,128]{1,0:T(1,128)}', space=vmem, size = 0x12000, scoped, tag = 'internal scratch']
  %s0 = inlined_call_operand.vmem [shape: f32[2,8,16,16], index: 0, kind: input, shape index: {}]
  %s1 = inlined_call_operand.vmem [shape: f32[2,8,16,16], index: 1, kind: input, shape index: {}]
  %s2 = inlined_call_operand.vmem [shape: f32[2,8,16,16], index: 2, kind: input, shape index: {}]
  %s3 = inlined_call_operand.vmem [shape: f32[8,16,128], index: 3, kind: input, shape index: {}]
  %s4 = inlined_call_operand.vmem [shape: f32[1,128], index: 4, kind: input, shape index: {}]
  %s5 = inlined_call_operand.hbm [shape: f32[2,16,128], index: 5, kind: output, shape index: {}]
  %s6 = sld [smem:[#allocation0]]
  $region53: #{attention_pallas.3} parent=0
    _
  %s8 = ssub.s32 1, %s6
  %s9 = scalar_select 0, %s8, %s6
  $region1: #{attention_pallas.3} parent=0
    #allocation2 [shape = 'u8[16384]{0}', space=vmem, size = 0x4000, scoped, tag = 'output window, operand 0']
    #allocation3 [shape = 's32[2]{0}', space=sflag, size = 0x8, scoped, tag = 'scoped memory for attention_pallas.3']
    %10 = vsyncpa [#allocation3], 0
    %s11 = scalar_lea.sflag [#allocation3], 1
    %12 = vsyncpa %s11, 0
    loop: start=0, step=1, limit=4
    $region2: #{attention_pallas.3} parent=1 // loop_pre_header
      _
    $region3: #{attention_pallas.3} parent=1 // loop_header
      %s14 = sphi 0, %s18
      %p15 = scmp.ge.s32.totalorder %s14, 4
      %s24 = sphi 0, %s26
      %s27 = sphi 0, %s24
      %s28 = sphi 0, %s27
      %s44 = sphi 0, %s28
      %s50 = sphi 0, %s52
      %s53 = sphi 0, %s50
      %s54 = sphi 0, %s53
      %s70 = sphi 0, %s54
      %s76 = sphi 0, %s78
      %s79 = sphi 0, %s76
      %s80 = sphi 0, %s79
      %s96 = sphi 0, %s80
      %s100 = sphi 0, %s100
      %s102 = sphi 0, %s100
      %s103 = sphi 0, %s102
      %s117 = sphi 0, %s103
      %s121 = sphi 0, %s121
      %s123 = sphi 0, %s121
      %s124 = sphi 0, %s123
      %s138 = sphi 0, %s124
      %s144 = sphi 0, %s146
      %s147 = sphi 0, %s144
      %s148 = sphi 0, %s147
      %s164 = sphi 0, %s148
    $region4: #{attention_pallas.3} parent=1 // loop_header_branch
      %17 = sbr.rel (%p15) target = $region8
    $region5: #{attention_pallas.3} parent=1 // loop_body
      %s19 = ssub.s32 %s14, 1
      %s20 = ssub.s32 %s14, 2
      %s21 = sadd.s32 %s14, 1
      %s22 = ssub.s32 %s14, %s21
      %p23 = scmp.eq.s32.totalorder %s22, 0
      %s25 = sadd.s32 %s24, 1
      %s26 = scalar_select %p23, %s24, %s25
      %p29 = pneg %p23
      %p30 = scmp.eq.s32.totalorder %s14, 1
      %p31 = por %p29, %p30
      %p32 = scmp.ne.s32.totalorder %s24, %s27
      %p33 = scmp.eq.s32.totalorder %s14, 0
      %p34 = por %p32, %p33
      %p35 = scmp.ne.s32.totalorder %s24, %s27
      %p36 = scmp.eq.s32.totalorder %s19, 1
      %p37 = por %p35, %p36
      %p38 = scmp.ne.s32.totalorder %s27, %s28
      %p39 = scmp.eq.s32.totalorder %s19, 0
      %p40 = por %p38, %p39
      %p41 = scmp.ne.s32.totalorder %s27, %s28
      %p42 = scmp.eq.s32.totalorder %s20, 1
      %p43 = por %p41, %p42
      %p45 = scmp.ne.s32.totalorder %s28, %s44
      %p46 = scmp.eq.s32.totalorder %s20, 0
      %p47 = por %p45, %p46
      %s48 = ssub.s32 %s14, %s21
      %p49 = scmp.eq.s32.totalorder %s48, 0
      %s51 = sadd.s32 %s50, 1
      %s52 = scalar_select %p49, %s50, %s51
      %p55 = pneg %p49
      %p56 = scmp.eq.s32.totalorder %s14, 1
      %p57 = por %p55, %p56
      %p58 = scmp.ne.s32.totalorder %s50, %s53
      %p59 = scmp.eq.s32.totalorder %s14, 0
      %p60 = por %p58, %p59
      %p61 = scmp.ne.s32.totalorder %s50, %s53
      %p62 = scmp.eq.s32.totalorder %s19, 1
      %p63 = por %p61, %p62
      %p64 = scmp.ne.s32.totalorder %s53, %s54
      %p65 = scmp.eq.s32.totalorder %s19, 0
      %p66 = por %p64, %p65
      %p67 = scmp.ne.s32.totalorder %s53, %s54
      %p68 = scmp.eq.s32.totalorder %s20, 1
      %p69 = por %p67, %p68
      %p71 = scmp.ne.s32.totalorder %s54, %s70
      %p72 = scmp.eq.s32.totalorder %s20, 0
      %p73 = por %p71, %p72
      %s74 = ssub.s32 %s14, %s21
      %p75 = scmp.eq.s32.totalorder %s74, 0
      %s77 = sadd.s32 %s76, 1
      %s78 = scalar_select %p75, %s76, %s77
      %p81 = pneg %p75
      %p82 = scmp.eq.s32.totalorder %s14, 1
      %p83 = por %p81, %p82
      %p84 = scmp.ne.s32.totalorder %s76, %s79
      %p85 = scmp.eq.s32.totalorder %s14, 0
      %p86 = por %p84, %p85
      %p87 = scmp.ne.s32.totalorder %s76, %s79
      %p88 = scmp.eq.s32.totalorder %s19, 1
      %p89 = por %p87, %p88
      %p90 = scmp.ne.s32.totalorder %s79, %s80
      %p91 = scmp.eq.s32.totalorder %s19, 0
      %p92 = por %p90, %p91
      %p93 = scmp.ne.s32.totalorder %s79, %s80
      %p94 = scmp.eq.s32.totalorder %s20, 1
      %p95 = por %p93, %p94
      %p97 = scmp.ne.s32.totalorder %s80, %s96
      %p98 = scmp.eq.s32.totalorder %s20, 0
      %p99 = por %p97, %p98
      %s101 = sadd.s32 %s100, 1
      %p104 = scmp.eq.s32.totalorder %s14, 1
      %p105 = scmp.ne.s32.totalorder %s100, %s102
      %p106 = scmp.eq.s32.totalorder %s14, 0
      %p107 = por %p105, %p106
      %p108 = scmp.ne.s32.totalorder %s100, %s102
      %p109 = scmp.eq.s32.totalorder %s19, 1
      %p110 = por %p108, %p109
      %p111 = scmp.ne.s32.totalorder %s102, %s103
      %p112 = scmp.eq.s32.totalorder %s19, 0
      %p113 = por %p111, %p112
      %p114 = scmp.ne.s32.totalorder %s102, %s103
      %p115 = scmp.eq.s32.totalorder %s20, 1
      %p116 = por %p114, %p115
      %p118 = scmp.ne.s32.totalorder %s103, %s117
      %p119 = scmp.eq.s32.totalorder %s20, 0
      %p120 = por %p118, %p119
      %s122 = sadd.s32 %s121, 1
      %p125 = scmp.eq.s32.totalorder %s14, 1
      %p126 = scmp.ne.s32.totalorder %s121, %s123
      %p127 = scmp.eq.s32.totalorder %s14, 0
      %p128 = por %p126, %p127
      %p129 = scmp.ne.s32.totalorder %s121, %s123
      %p130 = scmp.eq.s32.totalorder %s19, 1
      %p131 = por %p129, %p130
      %p132 = scmp.ne.s32.totalorder %s123, %s124
      %p133 = scmp.eq.s32.totalorder %s19, 0
      %p134 = por %p132, %p133
      %p135 = scmp.ne.s32.totalorder %s123, %s124
      %p136 = scmp.eq.s32.totalorder %s20, 1
      %p137 = por %p135, %p136
      %p139 = scmp.ne.s32.totalorder %s124, %s138
      %p140 = scmp.eq.s32.totalorder %s20, 0
      %p141 = por %p139, %p140
      %s142 = ssub.s32 %s14, %s21
      %p143 = scmp.eq.s32.totalorder %s142, 0
      %s145 = sadd.s32 %s144, 1
      %s146 = scalar_select %p143, %s144, %s145
      %p149 = pneg %p143
      %p150 = scmp.eq.s32.totalorder %s14, 1
      %p151 = por %p149, %p150
      %p152 = scmp.ne.s32.totalorder %s144, %s147
      %p153 = scmp.eq.s32.totalorder %s14, 0
      %p154 = por %p152, %p153
      %p155 = scmp.ne.s32.totalorder %s144, %s147
      %p156 = scmp.eq.s32.totalorder %s19, 1
      %p157 = por %p155, %p156
      %p158 = scmp.ne.s32.totalorder %s147, %s148
      %p159 = scmp.eq.s32.totalorder %s19, 0
      %p160 = por %p158, %p159
      %p161 = scmp.ne.s32.totalorder %s147, %s148
      %p162 = scmp.eq.s32.totalorder %s20, 1
      %p163 = por %p161, %p162
      %p165 = scmp.ne.s32.totalorder %s148, %s164
      %p166 = scmp.eq.s32.totalorder %s20, 0
      %p167 = por %p165, %p166
      %p168 = scmp.le.s32.totalorder 1, %s14
      %p169 = scmp.lt.s32.totalorder %s14, 3
      %p170 = pnand %p168, %p169
      %p171 = pneg %p170
      // Predicated region
      $region9: #{attention_pallas.3} parent=5 // pred_check
        _
      $region10: #{attention_pallas.3} parent=5 // pred_check_branch
        %173 = sbr.rel (%p170) target = $region12
      $region11: #{attention_pallas.3} parent=5 // pred_region
        %s174 = ssub.s32 %s14, 1
        // Predicated region
        $region13: #{attention_pallas.3} parent=11 // pred_check
          %p175 = pneg %p113
        $region14: #{attention_pallas.3} parent=11 // pred_check_branch
          %177 = sbr.rel (%p175) target = $region16
        $region15: #{attention_pallas.3} parent=11 // pred_region
          _
        $region16: #{attention_pallas.3} parent=11 // pred_fallthru
          _
        // Predicated region
        $region17: #{attention_pallas.3} parent=11 // pred_check
          %p178 = pneg %p134
        $region18: #{attention_pallas.3} parent=11 // pred_check_branch
          %180 = sbr.rel (%p178) target = $region20
        $region19: #{attention_pallas.3} parent=11 // pred_region
          _
        $region20: #{attention_pallas.3} parent=11 // pred_fallthru
          _
      $region12: #{attention_pallas.3} parent=5 // pred_fallthru
        _
      %p181 = scmp.lt.s32.totalorder %s14, 2
      // Predicated region
      $region21: #{attention_pallas.3} parent=5 // pred_check
        %p182 = pneg %p181
      $region22: #{attention_pallas.3} parent=5 // pred_check_branch
        %184 = sbr.rel (%p182) target = $region24
      $region23: #{attention_pallas.3} parent=5 // pred_region
        // Predicated region
        $region25: #{attention_pallas.3} parent=23 // pred_check
          %p185 = pneg %p34
        $region26: #{attention_pallas.3} parent=23 // pred_check_branch
          %187 = sbr.rel (%p185) target = $region28
        $region27: #{attention_pallas.3} parent=23 // pred_region
          %p188 = scmp.lt.s32.totalorder %s14, 1
          %s189 = scalar_select %p188, %s14, 1
          %s190 = smul.addr %s189, 16
          %s191 = smul.addr %s190, 8
          %s192 = scalar_lea.vmem %s0, %s191
        $region28: #{attention_pallas.3} parent=23 // pred_fallthru
          _
        // Predicated region
        $region29: #{attention_pallas.3} parent=23 // pred_check
          %p193 = pneg %p60
        $region30: #{attention_pallas.3} parent=23 // pred_check_branch
          %195 = sbr.rel (%p193) target = $region32
        $region31: #{attention_pallas.3} parent=23 // pred_region
          %p196 = scmp.lt.s32.totalorder %s14, 1
          %s197 = scalar_select %p196, %s14, 1
          %s198 = smul.addr %s197, 16
          %s199 = smul.addr %s198, 8
          %s200 = scalar_lea.vmem %s1, %s199
        $region32: #{attention_pallas.3} parent=23 // pred_fallthru
          _
        // Predicated region
        $region33: #{attention_pallas.3} parent=23 // pred_check
          %p201 = pneg %p86
        $region34: #{attention_pallas.3} parent=23 // pred_check_branch
          %203 = sbr.rel (%p201) target = $region36
        $region35: #{attention_pallas.3} parent=23 // pred_region
          %p204 = scmp.lt.s32.totalorder %s14, 1
          %s205 = scalar_select %p204, %s14, 1
          %s206 = smul.addr %s205, 16
          %s207 = smul.addr %s206, 8
          %s208 = scalar_lea.vmem %s2, %s207
        $region36: #{attention_pallas.3} parent=23 // pred_fallthru
          _
      $region24: #{attention_pallas.3} parent=5 // pred_fallthru
        _
      %p209 = scmp.le.s32.totalorder 1, %s14
      %p210 = scmp.lt.s32.totalorder %s14, 3
      %p211 = pnand %p209, %p210
      %p212 = pneg %p211
      // Predicated region
      $region37: #{attention_pallas.3} parent=5 // pred_check
        _
      $region38: #{attention_pallas.3} parent=5 // pred_check_branch
        %214 = sbr.rel (%p211) target = $region40
      $region39: #{attention_pallas.3} parent=5 // pred_region
        %s215 = ssub.s32 %s14, 1
        %p216 = scmp.lt.s32.totalorder %s19, 1
        %s217 = scalar_select %p216, %s19, 1
        %s218 = smul.addr %s217, 16
        %s219 = smul.addr %s218, 8
        %s220 = scalar_lea.vmem %s0, %s219
        %p221 = pneg %p40
        %p222 = pneg %p37
        %p223 = scmp.lt.s32.totalorder %s19, 1
        %s224 = scalar_select %p223, %s19, 1
        %s225 = smul.addr %s224, 16
        %s226 = smul.addr %s225, 8
        %s227 = scalar_lea.vmem %s1, %s226
        %p228 = pneg %p66
        %p229 = pneg %p63
        %p230 = scmp.lt.s32.totalorder %s19, 1
        %s231 = scalar_select %p230, %s19, 1
        %s232 = smul.addr %s231, 16
        %s233 = smul.addr %s232, 8
        %s234 = scalar_lea.vmem %s2, %s233
        %p235 = pneg %p92
        %p236 = pneg %p89
        %p237 = pneg %p113
        %p238 = pneg %p110
        %p239 = pneg %p134
        %p240 = pneg %p131
        %p241 = pneg %p160
        %p242 = pneg %p157
        %s243 = sand.u32 %s147, 1
        %s244 = scalar_lea.sflag [#allocation3], %s243
        %s245 = sand.u32 %s147, 1
        %s246 = smul.addr %s245, 16
        %s247 = scalar_lea.vmem [#allocation2], %s246
        %p248 = scmp.lt.s32.totalorder %s19, 1
        %s249 = scalar_select %p248, %s19, 1
        %s250 = smul.addr %s249, 16
        %s251 = smul.addr %s250, 8
        %s252 = scalar_lea.vmem %s0, %s251
        %p253 = scmp.lt.s32.totalorder %s19, 1
        %s254 = scalar_select %p253, %s19, 1
        %s255 = smul.addr %s254, 16
        %s256 = smul.addr %s255, 8
        %s257 = scalar_lea.vmem %s1, %s256
        %p258 = scmp.lt.s32.totalorder %s19, 1
        %s259 = scalar_select %p258, %s19, 1
        %s260 = smul.addr %s259, 16
        %s261 = smul.addr %s260, 8
        %s262 = scalar_lea.vmem %s2, %s261
        %v263 = vld [vmem:[%s252] sm:$0xff]
        %v264 = vld [vmem:[%s252 + $0x8] sm:$0xff]
        %v265 = vld [vmem:[%s252 + $0x10] sm:$0xff]
        %v266 = vld [vmem:[%s252 + $0x18] sm:$0xff]
        %v267 = vld [vmem:[%s252 + $0x20] sm:$0xff]
        %v268 = vld [vmem:[%s252 + $0x28] sm:$0xff]
        %v269 = vld [vmem:[%s252 + $0x30] sm:$0xff]
        %v270 = vld [vmem:[%s252 + $0x38] sm:$0xff]
        %v271 = vld [vmem:[%s252 + $0x40] sm:$0xff]
        %v272 = vld [vmem:[%s252 + $0x48] sm:$0xff]
        %v273 = vld [vmem:[%s252 + $0x50] sm:$0xff]
        %v274 = vld [vmem:[%s252 + $0x58] sm:$0xff]
        %v275 = vld [vmem:[%s252 + $0x60] sm:$0xff]
        %v276 = vld [vmem:[%s252 + $0x68] sm:$0xff]
        %v277 = vld [vmem:[%s252 + $0x70] sm:$0xff]
        %v278 = vld [vmem:[%s252 + $0x78] sm:$0xff]
        %v279 = vld [vmem:[%s257] sm:$0xff]
        %v280 = vld [vmem:[%s257 + $0x8] sm:$0xff]
        %v281 = vld [vmem:[%s257 + $0x10] sm:$0xff]
        %v282 = vld [vmem:[%s257 + $0x18] sm:$0xff]
        %v283 = vld [vmem:[%s257 + $0x20] sm:$0xff]
        %v284 = vld [vmem:[%s257 + $0x28] sm:$0xff]
        %v285 = vld [vmem:[%s257 + $0x30] sm:$0xff]
        %v286 = vld [vmem:[%s257 + $0x38] sm:$0xff]
        %v287 = vld [vmem:[%s257 + $0x40] sm:$0xff]
        %v288 = vld [vmem:[%s257 + $0x48] sm:$0xff]
        %v289 = vld [vmem:[%s257 + $0x50] sm:$0xff]
        %v290 = vld [vmem:[%s257 + $0x58] sm:$0xff]
        %v291 = vld [vmem:[%s257 + $0x60] sm:$0xff]
        %v292 = vld [vmem:[%s257 + $0x68] sm:$0xff]
        %v293 = vld [vmem:[%s257 + $0x70] sm:$0xff]
        %v294 = vld [vmem:[%s257 + $0x78] sm:$0xff]
        %v295 = vld [vmem:[%s262] sm:$0xff]
        %v296 = vld [vmem:[%s262 + $0x8] sm:$0xff]
        %v297 = vld [vmem:[%s262 + $0x10] sm:$0xff]
        %v298 = vld [vmem:[%s262 + $0x18] sm:$0xff]
        %v299 = vld [vmem:[%s262 + $0x20] sm:$0xff]
        %v300 = vld [vmem:[%s262 + $0x28] sm:$0xff]
        %v301 = vld [vmem:[%s262 + $0x30] sm:$0xff]
        %v302 = vld [vmem:[%s262 + $0x38] sm:$0xff]
        %v303 = vld [vmem:[%s262 + $0x40] sm:$0xff]
        %v304 = vld [vmem:[%s262 + $0x48] sm:$0xff]
        %v305 = vld [vmem:[%s262 + $0x50] sm:$0xff]
        %v306 = vld [vmem:[%s262 + $0x58] sm:$0xff]
        %v307 = vld [vmem:[%s262 + $0x60] sm:$0xff]
        %v308 = vld [vmem:[%s262 + $0x68] sm:$0xff]
        %v309 = vld [vmem:[%s262 + $0x70] sm:$0xff]
        %v310 = vld [vmem:[%s262 + $0x78] sm:$0xff]
        %vm311 = vcmask 130048
        %v313 = vsel %vm311, %v263, 0
        %v316 = vsel %vm311, %v264, 0
        %v319 = vsel %vm311, %v279, 0
        %v322 = vsel %vm311, %v280, 0
        %324 = vmatprep.subr.mxu0 0.0
        %325 = vmatpush1.xpose.msra.mxu0 %v319
        %326 = vmatprep.subr.mxu0 0.0
        %327 = vmatpush1.xpose.msra.mxu0 %v322
        %328 = vmatprep.subr.mxu0 0.0
        %329 = vmatpush1.xpose.msra.mxu0 0.0
        %330 = vmatprep.subr.mxu0 0.0
        %331 = vmatpush1.xpose.msra.mxu0 0.0
        %332 = vmatprep.subr.mxu0 0.0
        %333 = vmatpush1.xpose.msra.mxu0 0.0
        %334 = vmatprep.subr.mxu0 0.0
        %335 = vmatpush1.xpose.msra.mxu0 0.0
        %336 = vmatprep.subr.mxu0 0.0
        %337 = vmatpush1.xpose.msra.mxu0 0.0
        %338 = vmatprep.subr.mxu0 0.0
        %339 = vmatpush1.xpose.msra.mxu0 0.0
        %340 = vmatprep.subr.mxu0 0.0
        %341 = vmatpush1.xpose.msra.mxu0 0.0
        %342 = vmatprep.subr.mxu0 0.0
        %343 = vmatpush1.xpose.msra.mxu0 0.0
        %344 = vmatprep.subr.mxu0 0.0
        %345 = vmatpush1.xpose.msra.mxu0 0.0
        %346 = vmatprep.subr.mxu0 0.0
        %347 = vmatpush1.xpose.msra.mxu0 0.0
        %348 = vmatprep.subr.mxu0 0.0
        %349 = vmatpush1.xpose.msra.mxu0 0.0
        %350 = vmatprep.subr.mxu0 0.0
        %351 = vmatpush1.xpose.msra.mxu0 0.0
        %352 = vmatprep.subr.mxu0 0.0
        %353 = vmatpush1.xpose.msra.mxu0 0.0
        %354 = vmatprep.subr.mxu0 0.0
        %355 = vmatpush1.xpose.msra.mxu0 0.0
        %356 = vmatprep.subr.mxu0 0.0
        %357 = vmatpush1.xpose.msra.mxu0 0.0
        %358 = vmatprep.subr.mxu0 0.0
        %359 = vmatpush1.xpose.msra.mxu0 0.0
        %360 = vmatprep.subr.mxu0 0.0
        %361 = vmatpush1.xpose.msra.mxu0 0.0
        %362 = vmatprep.subr.mxu0 0.0
        %363 = vmatpush1.xpose.msra.mxu0 0.0
        %364 = vmatprep.subr.mxu0 0.0
        %365 = vmatpush1.xpose.msra.mxu0 0.0
        %366 = vmatprep.subr.mxu0 0.0
        %367 = vmatpush1.xpose.msra.mxu0 0.0
        %368 = vmatprep.subr.mxu0 0.0
        %369 = vmatpush1.xpose.msra.mxu0 0.0
        %370 = vmatprep.subr.mxu0 0.0
        %371 = vmatpush1.xpose.msra.mxu0 0.0
        %372 = vmatprep.subr.mxu0 0.0
        %373 = vmatpush1.xpose.msra.mxu0 0.0
        %374 = vmatprep.subr.mxu0 0.0
        %375 = vmatpush1.xpose.msra.mxu0 0.0
        %376 = vmatprep.subr.mxu0 0.0
        %377 = vmatpush1.xpose.msra.mxu0 0.0
        %378 = vmatprep.subr.mxu0 0.0
        %379 = vmatpush1.xpose.msra.mxu0 0.0
        %380 = vmatprep.subr.mxu0 0.0
        %381 = vmatpush1.xpose.msra.mxu0 0.0
        %382 = vmatprep.subr.mxu0 0.0
        %383 = vmatpush1.xpose.msra.mxu0 0.0
        %384 = vmatprep.subr.mxu0 0.0
        %385 = vmatpush1.xpose.msra.mxu0 0.0
        %386 = vmatprep.subr.mxu0 0.0
        %387 = vmatpush1.xpose.msra.mxu0 0.0
        %388 = vmatprep.mubr.f32.mxu0 0.0
        %389 = vmatmul.mubr.f32.gmra.mrb[0].mxu0 %v313
        %v390 = vpop.f32.mrb[0].mxu0
        %v391 = vadd.f32 0.0, %v390
        %v392 = vpop.f32.mrb[0].mxu0
        %393 = vmatprep.mubr.f32.mxu0 0.0
        %394 = vmatmul.mubr.f32.gmra.mrb[0].mxu0 %v316
        %v395 = vpop.f32.mrb[0].mxu0
        %v396 = vadd.f32 0.0, %v395
        %v397 = vpop.f32.mrb[0].mxu0
        %398 = vdwg.mxu0
        %v400 = vsel %vm311, %v265, 0
        %v403 = vsel %vm311, %v266, 0
        %v406 = vsel %vm311, %v281, 0
        %v409 = vsel %vm311, %v282, 0
        %411 = vmatprep.subr.mxu0 0.0
        %412 = vmatpush1.xpose.msra.mxu0 %v406
        %413 = vmatprep.subr.mxu0 0.0
        %414 = vmatpush1.xpose.msra.mxu0 %v409
        %415 = vmatprep.subr.mxu0 0.0
        %416 = vmatpush1.xpose.msra.mxu0 0.0
        %417 = vmatprep.subr.mxu0 0.0
        %418 = vmatpush1.xpose.msra.mxu0 0.0
        %419 = vmatprep.subr.mxu0 0.0
        %420 = vmatpush1.xpose.msra.mxu0 0.0
        %421 = vmatprep.subr.mxu0 0.0
        %422 = vmatpush1.xpose.msra.mxu0 0.0
        %423 = vmatprep.subr.mxu0 0.0
        %424 = vmatpush1.xpose.msra.mxu0 0.0
        %425 = vmatprep.subr.mxu0 0.0
        %426 = vmatpush1.xpose.msra.mxu0 0.0
        %427 = vmatprep.subr.mxu0 0.0
        %428 = vmatpush1.xpose.msra.mxu0 0.0
        %429 = vmatprep.subr.mxu0 0.0
        %430 = vmatpush1.xpose.msra.mxu0 0.0
        %431 = vmatprep.subr.mxu0 0.0
        %432 = vmatpush1.xpose.msra.mxu0 0.0
        %433 = vmatprep.subr.mxu0 0.0
        %434 = vmatpush1.xpose.msra.mxu0 0.0
        %435 = vmatprep.subr.mxu0 0.0
        %436 = vmatpush1.xpose.msra.mxu0 0.0
        %437 = vmatprep.subr.mxu0 0.0
        %438 = vmatpush1.xpose.msra.mxu0 0.0
        %439 = vmatprep.subr.mxu0 0.0
        %440 = vmatpush1.xpose.msra.mxu0 0.0
        %441 = vmatprep.subr.mxu0 0.0
        %442 = vmatpush1.xpose.msra.mxu0 0.0
        %443 = vmatprep.subr.mxu0 0.0
        %444 = vmatpush1.xpose.msra.mxu0 0.0
        %445 = vmatprep.subr.mxu0 0.0
        %446 = vmatpush1.xpose.msra.mxu0 0.0
        %447 = vmatprep.subr.mxu0 0.0
        %448 = vmatpush1.xpose.msra.mxu0 0.0
        %449 = vmatprep.subr.mxu0 0.0
        %450 = vmatpush1.xpose.msra.mxu0 0.0
        %451 = vmatprep.subr.mxu0 0.0
        %452 = vmatpush1.xpose.msra.mxu0 0.0
        %453 = vmatprep.subr.mxu0 0.0
        %454 = vmatpush1.xpose.msra.mxu0 0.0
        %455 = vmatprep.subr.mxu0 0.0
        %456 = vmatpush1.xpose.msra.mxu0 0.0
        %457 = vmatprep.subr.mxu0 0.0
        %458 = vmatpush1.xpose.msra.mxu0 0.0
        %459 = vmatprep.subr.mxu0 0.0
        %460 = vmatpush1.xpose.msra.mxu0 0.0
        %461 = vmatprep.subr.mxu0 0.0
        %462 = vmatpush1.xpose.msra.mxu0 0.0
        %463 = vmatprep.subr.mxu0 0.0
        %464 = vmatpush1.xpose.msra.mxu0 0.0
        %465 = vmatprep.subr.mxu0 0.0
        %466 = vmatpush1.xpose.msra.mxu0 0.0
        %467 = vmatprep.subr.mxu0 0.0
        %468 = vmatpush1.xpose.msra.mxu0 0.0
        %469 = vmatprep.subr.mxu0 0.0
        %470 = vmatpush1.xpose.msra.mxu0 0.0
        %471 = vmatprep.subr.mxu0 0.0
        %472 = vmatpush1.xpose.msra.mxu0 0.0
        %473 = vmatprep.subr.mxu0 0.0
        %474 = vmatpush1.xpose.msra.mxu0 0.0
        %475 = vmatprep.mubr.f32.mxu0 0.0
        %476 = vmatmul.mubr.f32.gmra.mrb[0].mxu0 %v400
        %v477 = vpop.f32.mrb[0].mxu0
        %v478 = vadd.f32 0.0, %v477
        %v479 = vpop.f32.mrb[0].mxu0
        %480 = vmatprep.mubr.f32.mxu0 0.0
        %481 = vmatmul.mubr.f32.gmra.mrb[0].mxu0 %v403
        %v482 = vpop.f32.mrb[0].mxu0
        %v483 = vadd.f32 0.0, %v482
        %v484 = vpop.f32.mrb[0].mxu0
        %485 = vdwg.mxu0
        %v487 = vsel %vm311, %v267, 0
        %v490 = vsel %vm311, %v268, 0
        %v493 = vsel %vm311, %v283, 0
        %v496 = vsel %vm311, %v284, 0
        %498 = vmatprep.subr.mxu0 0.0
        %499 = vmatpush1.xpose.msra.mxu0 %v493
        %500 = vmatprep.subr.mxu0 0.0
        %501 = vmatpush1.xpose.msra.mxu0 %v496
        %502 = vmatprep.subr.mxu0 0.0
        %503 = vmatpush1.xpose.msra.mxu0 0.0
        %504 = vmatprep.subr.mxu0 0.0
        %505 = vmatpush1.xpose.msra.mxu0 0.0
        %506 = vmatprep.subr.mxu0 0.0
        %507 = vmatpush1.xpose.msra.mxu0 0.0
        %508 = vmatprep.subr.mxu0 0.0
        %509 = vmatpush1.xpose.msra.mxu0 0.0
        %510 = vmatprep.subr.mxu0 0.0
        %511 = vmatpush1.xpose.msra.mxu0 0.0
        %512 = vmatprep.subr.mxu0 0.0
        %513 = vmatpush1.xpose.msra.mxu0 0.0
        %514 = vmatprep.subr.mxu0 0.0
        %515 = vmatpush1.xpose.msra.mxu0 0.0
        %516 = vmatprep.subr.mxu0 0.0
        %517 = vmatpush1.xpose.msra.mxu0 0.0
        %518 = vmatprep.subr.mxu0 0.0
        %519 = vmatpush1.xpose.msra.mxu0 0.0
        %520 = vmatprep.subr.mxu0 0.0
        %521 = vmatpush1.xpose.msra.mxu0 0.0
        %522 = vmatprep.subr.mxu0 0.0
        %523 = vmatpush1.xpose.msra.mxu0 0.0
        %524 = vmatprep.subr.mxu0 0.0
        %525 = vmatpush1.xpose.msra.mxu0 0.0
        %526 = vmatprep.subr.mxu0 0.0
        %527 = vmatpush1.xpose.msra.mxu0 0.0
        %528 = vmatprep.subr.mxu0 0.0
        %529 = vmatpush1.xpose.msra.mxu0 0.0
        %530 = vmatprep.subr.mxu0 0.0
        %531 = vmatpush1.xpose.msra.mxu0 0.0
        %532 = vmatprep.subr.mxu0 0.0
        %533 = vmatpush1.xpose.msra.mxu0 0.0
        %534 = vmatprep.subr.mxu0 0.0
        %535 = vmatpush1.xpose.msra.mxu0 0.0
        %536 = vmatprep.subr.mxu0 0.0
        %537 = vmatpush1.xpose.msra.mxu0 0.0
        %538 = vmatprep.subr.mxu0 0.0
        %539 = vmatpush1.xpose.msra.mxu0 0.0
        %540 = vmatprep.subr.mxu0 0.0
        %541 = vmatpush1.xpose.msra.mxu0 0.0
        %542 = vmatprep.subr.mxu0 0.0
        %543 = vmatpush1.xpose.msra.mxu0 0.0
        %544 = vmatprep.subr.mxu0 0.0
        %545 = vmatpush1.xpose.msra.mxu0 0.0
        %546 = vmatprep.subr.mxu0 0.0
        %547 = vmatpush1.xpose.msra.mxu0 0.0
        %548 = vmatprep.subr.mxu0 0.0
        %549 = vmatpush1.xpose.msra.mxu0 0.0
        %550 = vmatprep.subr.mxu0 0.0
        %551 = vmatpush1.xpose.msra.mxu0 0.0
        %552 = vmatprep.subr.mxu0 0.0
        %553 = vmatpush1.xpose.msra.mxu0 0.0
        %554 = vmatprep.subr.mxu0 0.0
        %555 = vmatpush1.xpose.msra.mxu0 0.0
        %556 = vmatprep.subr.mxu0 0.0
        %557 = vmatpush1.xpose.msra.mxu0 0.0
        %558 = vmatprep.subr.mxu0 0.0
        %559 = vmatpush1.xpose.msra.mxu0 0.0
        %560 = vmatprep.subr.mxu0 0.0
        %561 = vmatpush1.xpose.msra.mxu0 0.0
        %562 = vmatprep.mubr.f32.mxu0 0.0
        %563 = vmatmul.mubr.f32.gmra.mrb[0].mxu0 %v487
        %v564 = vpop.f32.mrb[0].mxu0
        %v565 = vadd.f32 0.0, %v564
        %v566 = vpop.f32.mrb[0].mxu0
        %567 = vmatprep.mubr.f32.mxu0 0.0
        %568 = vmatmul.mubr.f32.gmra.mrb[0].mxu0 %v490
        %v569 = vpop.f32.mrb[0].mxu0
        %v570 = vadd.f32 0.0, %v569
        %v571 = vpop.f32.mrb[0].mxu0
        %572 = vdwg.mxu0
        %v574 = vsel %vm311, %v269, 0
        %v577 = vsel %vm311, %v270, 0
        %v580 = vsel %vm311, %v285, 0
        %v583 = vsel %vm311, %v286, 0
        %585 = vmatprep.subr.mxu0 0.0
        %586 = vmatpush1.xpose.msra.mxu0 %v580
        %587 = vmatprep.subr.mxu0 0.0
        %588 = vmatpush1.xpose.msra.mxu0 %v583
        %589 = vmatprep.subr.mxu0 0.0
        %590 = vmatpush1.xpose.msra.mxu0 0.0
        %591 = vmatprep.subr.mxu0 0.0
        %592 = vmatpush1.xpose.msra.mxu0 0.0
        %593 = vmatprep.subr.mxu0 0.0
        %594 = vmatpush1.xpose.msra.mxu0 0.0
        %595 = vmatprep.subr.mxu0 0.0
        %596 = vmatpush1.xpose.msra.mxu0 0.0
        %597 = vmatprep.subr.mxu0 0.0
        %598 = vmatpush1.xpose.msra.mxu0 0.0
        %599 = vmatprep.subr.mxu0 0.0
        %600 = vmatpush1.xpose.msra.mxu0 0.0
        %601 = vmatprep.subr.mxu0 0.0
        %602 = vmatpush1.xpose.msra.mxu0 0.0
        %603 = vmatprep.subr.mxu0 0.0
        %604 = vmatpush1.xpose.msra.mxu0 0.0
        %605 = vmatprep.subr.mxu0 0.0
        %606 = vmatpush1.xpose.msra.mxu0 0.0
        %607 = vmatprep.subr.mxu0 0.0
        %608 = vmatpush1.xpose.msra.mxu0 0.0
        %609 = vmatprep.subr.mxu0 0.0
        %610 = vmatpush1.xpose.msra.mxu0 0.0
        %611 = vmatprep.subr.mxu0 0.0
        %612 = vmatpush1.xpose.msra.mxu0 0.0
        %613 = vmatprep.subr.mxu0 0.0
        %614 = vmatpush1.xpose.msra.mxu0 0.0
        %615 = vmatprep.subr.mxu0 0.0
        %616 = vmatpush1.xpose.msra.mxu0 0.0
        %617 = vmatprep.subr.mxu0 0.0
        %618 = vmatpush1.xpose.msra.mxu0 0.0
        %619 = vmatprep.subr.mxu0 0.0
        %620 = vmatpush1.xpose.msra.mxu0 0.0
        %621 = vmatprep.subr.mxu0 0.0
        %622 = vmatpush1.xpose.msra.mxu0 0.0
        %623 = vmatprep.subr.mxu0 0.0
        %624 = vmatpush1.xpose.msra.mxu0 0.0
        %625 = vmatprep.subr.mxu0 0.0
        %626 = vmatpush1.xpose.msra.mxu0 0.0
        %627 = vmatprep.subr.mxu0 0.0
        %628 = vmatpush1.xpose.msra.mxu0 0.0
        %629 = vmatprep.subr.mxu0 0.0
        %630 = vmatpush1.xpose.msra.mxu0 0.0
        %631 = vmatprep.subr.mxu0 0.0
        %632 = vmatpush1.xpose.msra.mxu0 0.0
        %633 = vmatprep.subr.mxu0 0.0
        %634 = vmatpush1.xpose.msra.mxu0 0.0
        %635 = vmatprep.subr.mxu0 0.0
        %636 = vmatpush1.xpose.msra.mxu0 0.0
        %637 = vmatprep.subr.mxu0 0.0
        %638 = vmatpush1.xpose.msra.mxu0 0.0
        %639 = vmatprep.subr.mxu0 0.0
        %640 = vmatpush1.xpose.msra.mxu0 0.0
        %641 = vmatprep.subr.mxu0 0.0
        %642 = vmatpush1.xpose.msra.mxu0 0.0
        %643 = vmatprep.subr.mxu0 0.0
        %644 = vmatpush1.xpose.msra.mxu0 0.0
        %645 = vmatprep.subr.mxu0 0.0
        %646 = vmatpush1.xpose.msra.mxu0 0.0
        %647 = vmatprep.subr.mxu0 0.0
        %648 = vmatpush1.xpose.msra.mxu0 0.0
        %649 = vmatprep.mubr.f32.mxu0 0.0
        %650 = vmatmul.mubr.f32.gmra.mrb[0].mxu0 %v574
        %v651 = vpop.f32.mrb[0].mxu0
        %v652 = vadd.f32 0.0, %v651
        %v653 = vpop.f32.mrb[0].mxu0
        %654 = vmatprep.mubr.f32.mxu0 0.0
        %655 = vmatmul.mubr.f32.gmra.mrb[0].mxu0 %v577
        %v656 = vpop.f32.mrb[0].mxu0
        %v657 = vadd.f32 0.0, %v656
        %v658 = vpop.f32.mrb[0].mxu0
        %659 = vdwg.mxu0
        %v661 = vsel %vm311, %v271, 0
        %v664 = vsel %vm311, %v272, 0
        %v667 = vsel %vm311, %v287, 0
        %v670 = vsel %vm311, %v288, 0
        %672 = vmatprep.subr.mxu0 0.0
        %673 = vmatpush1.xpose.msra.mxu0 %v667
        %674 = vmatprep.subr.mxu0 0.0
        %675 = vmatpush1.xpose.msra.mxu0 %v670
        %676 = vmatprep.subr.mxu0 0.0
        %677 = vmatpush1.xpose.msra.mxu0 0.0
        %678 = vmatprep.subr.mxu0 0.0
        %679 = vmatpush1.xpose.msra.mxu0 0.0
        %680 = vmatprep.subr.mxu0 0.0
        %681 = vmatpush1.xpose.msra.mxu0 0.0
        %682 = vmatprep.subr.mxu0 0.0
        %683 = vmatpush1.xpose.msra.mxu0 0.0
        %684 = vmatprep.subr.mxu0 0.0
        %685 = vmatpush1.xpose.msra.mxu0 0.0
        %686 = vmatprep.subr.mxu0 0.0
        %687 = vmatpush1.xpose.msra.mxu0 0.0
        %688 = vmatprep.subr.mxu0 0.0
        %689 = vmatpush1.xpose.msra.mxu0 0.0
        %690 = vmatprep.subr.mxu0 0.0
        %691 = vmatpush1.xpose.msra.mxu0 0.0
        %692 = vmatprep.subr.mxu0 0.0
        %693 = vmatpush1.xpose.msra.mxu0 0.0
        %694 = vmatprep.subr.mxu0 0.0
        %695 = vmatpush1.xpose.msra.mxu0 0.0
        %696 = vmatprep.subr.mxu0 0.0
        %697 = vmatpush1.xpose.msra.mxu0 0.0
        %698 = vmatprep.subr.mxu0 0.0
        %699 = vmatpush1.xpose.msra.mxu0 0.0
        %700 = vmatprep.subr.mxu0 0.0
        %701 = vmatpush1.xpose.msra.mxu0 0.0
        %702 = vmatprep.subr.mxu0 0.0
        %703 = vmatpush1.xpose.msra.mxu0 0.0
        %704 = vmatprep.subr.mxu0 0.0
        %705 = vmatpush1.xpose.msra.mxu0 0.0
        %706 = vmatprep.subr.mxu0 0.0
        %707 = vmatpush1.xpose.msra.mxu0 0.0
        %708 = vmatprep.subr.mxu0 0.0
        %709 = vmatpush1.xpose.msra.mxu0 0.0
        %710 = vmatprep.subr.mxu0 0.0
        %711 = vmatpush1.xpose.msra.mxu0 0.0
        %712 = vmatprep.subr.mxu0 0.0
        %713 = vmatpush1.xpose.msra.mxu0 0.0
        %714 = vmatprep.subr.mxu0 0.0
        %715 = vmatpush1.xpose.msra.mxu0 0.0
        %716 = vmatprep.subr.mxu0 0.0
        %717 = vmatpush1.xpose.msra.mxu0 0.0
        %718 = vmatprep.subr.mxu0 0.0
        %719 = vmatpush1.xpose.msra.mxu0 0.0
        %720 = vmatprep.subr.mxu0 0.0
        %721 = vmatpush1.xpose.msra.mxu0 0.0
        %722 = vmatprep.subr.mxu0 0.0
        %723 = vmatpush1.xpose.msra.mxu0 0.0
        %724 = vmatprep.subr.mxu0 0.0
        %725 = vmatpush1.xpose.msra.mxu0 0.0
        %726 = vmatprep.subr.mxu0 0.0
        %727 = vmatpush1.xpose.msra.mxu0 0.0
        %728 = vmatprep.subr.mxu0 0.0
        %729 = vmatpush1.xpose.msra.mxu0 0.0
        %730 = vmatprep.subr.mxu0 0.0
        %731 = vmatpush1.xpose.msra.mxu0 0.0
        %732 = vmatprep.subr.mxu0 0.0
        %733 = vmatpush1.xpose.msra.mxu0 0.0
        %734 = vmatprep.subr.mxu0 0.0
        %735 = vmatpush1.xpose.msra.mxu0 0.0
        %736 = vmatprep.mubr.f32.mxu0 0.0
        %737 = vmatmul.mubr.f32.gmra.mrb[0].mxu0 %v661
        %v738 = vpop.f32.mrb[0].mxu0
        %v739 = vadd.f32 0.0, %v738
        %v740 = vpop.f32.mrb[0].mxu0
        %741 = vmatprep.mubr.f32.mxu0 0.0
        %742 = vmatmul.mubr.f32.gmra.mrb[0].mxu0 %v664
        %v743 = vpop.f32.mrb[0].mxu0
        %v744 = vadd.f32 0.0, %v743
        %v745 = vpop.f32.mrb[0].mxu0
        %746 = vdwg.mxu0
        %v748 = vsel %vm311, %v273, 0
        %v751 = vsel %vm311, %v274, 0
        %v754 = vsel %vm311, %v289, 0
        %v757 = vsel %vm311, %v290, 0
        %759 = vmatprep.subr.mxu0 0.0
        %760 = vmatpush1.xpose.msra.mxu0 %v754
        %761 = vmatprep.subr.mxu0 0.0
        %762 = vmatpush1.xpose.msra.mxu0 %v757
        %763 = vmatprep.subr.mxu0 0.0
        %764 = vmatpush1.xpose.msra.mxu0 0.0
        %765 = vmatprep.subr.mxu0 0.0
        %766 = vmatpush1.xpose.msra.mxu0 0.0
        %767 = vmatprep.subr.mxu0 0.0
        %768 = vmatpush1.xpose.msra.mxu0 0.0
        %769 = vmatprep.subr.mxu0 0.0
        %770 = vmatpush1.xpose.msra.mxu0 0.0
        %771 = vmatprep.subr.mxu0 0.0
        %772 = vmatpush1.xpose.msra.mxu0 0.0
        %773 = vmatprep.subr.mxu0 0.0
        %774 = vmatpush1.xpose.msra.mxu0 0.0
        %775 = vmatprep.subr.mxu0 0.0
        %776 = vmatpush1.xpose.msra.mxu0 0.0
        %777 = vmatprep.subr.mxu0 0.0
        %778 = vmatpush1.xpose.msra.mxu0 0.0
        %779 = vmatprep.subr.mxu0 0.0
        %780 = vmatpush1.xpose.msra.mxu0 0.0
        %781 = vmatprep.subr.mxu0 0.0
        %782 = vmatpush1.xpose.msra.mxu0 0.0
        %783 = vmatprep.subr.mxu0 0.0
        %784 = vmatpush1.xpose.msra.mxu0 0.0
        %785 = vmatprep.subr.mxu0 0.0
        %786 = vmatpush1.xpose.msra.mxu0 0.0
        %787 = vmatprep.subr.mxu0 0.0
        %788 = vmatpush1.xpose.msra.mxu0 0.0
        %789 = vmatprep.subr.mxu0 0.0
        %790 = vmatpush1.xpose.msra.mxu0 0.0
        %791 = vmatprep.subr.mxu0 0.0
        %792 = vmatpush1.xpose.msra.mxu0 0.0
        %793 = vmatprep.subr.mxu0 0.0
        %794 = vmatpush1.xpose.msra.mxu0 0.0
        %795 = vmatprep.subr.mxu0 0.0
        %796 = vmatpush1.xpose.msra.mxu0 0.0
        %797 = vmatprep.subr.mxu0 0.0
        %798 = vmatpush1.xpose.msra.mxu0 0.0
        %799 = vmatprep.subr.mxu0 0.0
        %800 = vmatpush1.xpose.msra.mxu0 0.0
        %801 = vmatprep.subr.mxu0 0.0
        %802 = vmatpush1.xpose.msra.mxu0 0.0
        %803 = vmatprep.subr.mxu0 0.0
        %804 = vmatpush1.xpose.msra.mxu0 0.0
        %805 = vmatprep.subr.mxu0 0.0
        %806 = vmatpush1.xpose.msra.mxu0 0.0
        %807 = vmatprep.subr.mxu0 0.0
        %808 = vmatpush1.xpose.msra.mxu0 0.0
        %809 = vmatprep.subr.mxu0 0.0
        %810 = vmatpush1.xpose.msra.mxu0 0.0
        %811 = vmatprep.subr.mxu0 0.0
        %812 = vmatpush1.xpose.msra.mxu0 0.0
        %813 = vmatprep.subr.mxu0 0.0
        %814 = vmatpush1.xpose.msra.mxu0 0.0
        %815 = vmatprep.subr.mxu0 0.0
        %816 = vmatpush1.xpose.msra.mxu0 0.0
        %817 = vmatprep.subr.mxu0 0.0
        %818 = vmatpush1.xpose.msra.mxu0 0.0
        %819 = vmatprep.subr.mxu0 0.0
        %820 = vmatpush1.xpose.msra.mxu0 0.0
        %821 = vmatprep.subr.mxu0 0.0
        %822 = vmatpush1.xpose.msra.mxu0 0.0
        %823 = vmatprep.mubr.f32.mxu0 0.0
        %824 = vmatmul.mubr.f32.gmra.mrb[0].mxu0 %v748
        %v825 = vpop.f32.mrb[0].mxu0
        %v826 = vadd.f32 0.0, %v825
        %v827 = vpop.f32.mrb[0].mxu0
        %828 = vmatprep.mubr.f32.mxu0 0.0
        %829 = vmatmul.mubr.f32.gmra.mrb[0].mxu0 %v751
        %v830 = vpop.f32.mrb[0].mxu0
        %v831 = vadd.f32 0.0, %v830
        %v832 = vpop.f32.mrb[0].mxu0
        %833 = vdwg.mxu0
        %v835 = vsel %vm311, %v275, 0
        %v838 = vsel %vm311, %v276, 0
        %v841 = vsel %vm311, %v291, 0
        %v844 = vsel %vm311, %v292, 0
        %846 = vmatprep.subr.mxu0 0.0
        %847 = vmatpush1.xpose.msra.mxu0 %v841
        %848 = vmatprep.subr.mxu0 0.0
        %849 = vmatpush1.xpose.msra.mxu0 %v844
        %850 = vmatprep.subr.mxu0 0.0
        %851 = vmatpush1.xpose.msra.mxu0 0.0
        %852 = vmatprep.subr.mxu0 0.0
        %853 = vmatpush1.xpose.msra.mxu0 0.0
        %854 = vmatprep.subr.mxu0 0.0
        %855 = vmatpush1.xpose.msra.mxu0 0.0
        %856 = vmatprep.subr.mxu0 0.0
        %857 = vmatpush1.xpose.msra.mxu0 0.0
        %858 = vmatprep.subr.mxu0 0.0
        %859 = vmatpush1.xpose.msra.mxu0 0.0
        %860 = vmatprep.subr.mxu0 0.0
        %861 = vmatpush1.xpose.msra.mxu0 0.0
        %862 = vmatprep.subr.mxu0 0.0
        %863 = vmatpush1.xpose.msra.mxu0 0.0
        %864 = vmatprep.subr.mxu0 0.0
        %865 = vmatpush1.xpose.msra.mxu0 0.0
        %866 = vmatprep.subr.mxu0 0.0
        %867 = vmatpush1.xpose.msra.mxu0 0.0
        %868 = vmatprep.subr.mxu0 0.0
        %869 = vmatpush1.xpose.msra.mxu0 0.0
        %870 = vmatprep.subr.mxu0 0.0
        %871 = vmatpush1.xpose.msra.mxu0 0.0
        %872 = vmatprep.subr.mxu0 0.0
        %873 = vmatpush1.xpose.msra.mxu0 0.0
        %874 = vmatprep.subr.mxu0 0.0
        %875 = vmatpush1.xpose.msra.mxu0 0.0
        %876 = vmatprep.subr.mxu0 0.0
        %877 = vmatpush1.xpose.msra.mxu0 0.0
        %878 = vmatprep.subr.mxu0 0.0
        %879 = vmatpush1.xpose.msra.mxu0 0.0
        %880 = vmatprep.subr.mxu0 0.0
        %881 = vmatpush1.xpose.msra.mxu0 0.0
        %882 = vmatprep.subr.mxu0 0.0
        %883 = vmatpush1.xpose.msra.mxu0 0.0
        %884 = vmatprep.subr.mxu0 0.0
        %885 = vmatpush1.xpose.msra.mxu0 0.0
        %886 = vmatprep.subr.mxu0 0.0
        %887 = vmatpush1.xpose.msra.mxu0 0.0
        %888 = vmatprep.subr.mxu0 0.0
        %889 = vmatpush1.xpose.msra.mxu0 0.0
        %890 = vmatprep.subr.mxu0 0.0
        %891 = vmatpush1.xpose.msra.mxu0 0.0
        %892 = vmatprep.subr.mxu0 0.0
        %893 = vmatpush1.xpose.msra.mxu0 0.0
        %894 = vmatprep.subr.mxu0 0.0
        %895 = vmatpush1.xpose.msra.mxu0 0.0
        %896 = vmatprep.subr.mxu0 0.0
        %897 = vmatpush1.xpose.msra.mxu0 0.0
        %898 = vmatprep.subr.mxu0 0.0
        %899 = vmatpush1.xpose.msra.mxu0 0.0
        %900 = vmatprep.subr.mxu0 0.0
        %901 = vmatpush1.xpose.msra.mxu0 0.0
        %902 = vmatprep.subr.mxu0 0.0
        %903 = vmatpush1.xpose.msra.mxu0 0.0
        %904 = vmatprep.subr.mxu0 0.0
        %905 = vmatpush1.xpose.msra.mxu0 0.0
        %906 = vmatprep.subr.mxu0 0.0
        %907 = vmatpush1.xpose.msra.mxu0 0.0
        %908 = vmatprep.subr.mxu0 0.0
        %909 = vmatpush1.xpose.msra.mxu0 0.0
        %910 = vmatprep.mubr.f32.mxu0 0.0
        %911 = vmatmul.mubr.f32.gmra.mrb[0].mxu0 %v835
        %v912 = vpop.f32.mrb[0].mxu0
        %v913 = vadd.f32 0.0, %v912
        %v914 = vpop.f32.mrb[0].mxu0
        %915 = vmatprep.mubr.f32.mxu0 0.0
        %916 = vmatmul.mubr.f32.gmra.mrb[0].mxu0 %v838
        %v917 = vpop.f32.mrb[0].mxu0
        %v918 = vadd.f32 0.0, %v917
        %v919 = vpop.f32.mrb[0].mxu0
        %920 = vdwg.mxu0
        %v922 = vsel %vm311, %v277, 0
        %v925 = vsel %vm311, %v278, 0
        %v928 = vsel %vm311, %v293, 0
        %v931 = vsel %vm311, %v294, 0
        %933 = vmatprep.subr.mxu0 0.0
        %934 = vmatpush1.xpose.msra.mxu0 %v928
        %935 = vmatprep.subr.mxu0 0.0
        %936 = vmatpush1.xpose.msra.mxu0 %v931
        %937 = vmatprep.subr.mxu0 0.0
        %938 = vmatpush1.xpose.msra.mxu0 0.0
        %939 = vmatprep.subr.mxu0 0.0
        %940 = vmatpush1.xpose.msra.mxu0 0.0
        %941 = vmatprep.subr.mxu0 0.0
        %942 = vmatpush1.xpose.msra.mxu0 0.0
        %943 = vmatprep.subr.mxu0 0.0
        %944 = vmatpush1.xpose.msra.mxu0 0.0
        %945 = vmatprep.subr.mxu0 0.0
        %946 = vmatpush1.xpose.msra.mxu0 0.0
        %947 = vmatprep.subr.mxu0 0.0
        %948 = vmatpush1.xpose.msra.mxu0 0.0
        %949 = vmatprep.subr.mxu0 0.0
        %950 = vmatpush1.xpose.msra.mxu0 0.0
        %951 = vmatprep.subr.mxu0 0.0
        %952 = vmatpush1.xpose.msra.mxu0 0.0
        %953 = vmatprep.subr.mxu0 0.0
        %954 = vmatpush1.xpose.msra.mxu0 0.0
        %955 = vmatprep.subr.mxu0 0.0
        %956 = vmatpush1.xpose.msra.mxu0 0.0
        %957 = vmatprep.subr.mxu0 0.0
        %958 = vmatpush1.xpose.msra.mxu0 0.0
        %959 = vmatprep.subr.mxu0 0.0
        %960 = vmatpush1.xpose.msra.mxu0 0.0
        %961 = vmatprep.subr.mxu0 0.0
        %962 = vmatpush1.xpose.msra.mxu0 0.0
        %963 = vmatprep.subr.mxu0 0.0
        %964 = vmatpush1.xpose.msra.mxu0 0.0
        %965 = vmatprep.subr.mxu0 0.0
        %966 = vmatpush1.xpose.msra.mxu0 0.0
        %967 = vmatprep.subr.mxu0 0.0
        %968 = vmatpush1.xpose.msra.mxu0 0.0
        %969 = vmatprep.subr.mxu0 0.0
        %970 = vmatpush1.xpose.msra.mxu0 0.0
        %971 = vmatprep.subr.mxu0 0.0
        %972 = vmatpush1.xpose.msra.mxu0 0.0
        %973 = vmatprep.subr.mxu0 0.0
        %974 = vmatpush1.xpose.msra.mxu0 0.0
        %975 = vmatprep.subr.mxu0 0.0
        %976 = vmatpush1.xpose.msra.mxu0 0.0
        %977 = vmatprep.subr.mxu0 0.0
        %978 = vmatpush1.xpose.msra.mxu0 0.0
        %979 = vmatprep.subr.mxu0 0.0
        %980 = vmatpush1.xpose.msra.mxu0 0.0
        %981 = vmatprep.subr.mxu0 0.0
        %982 = vmatpush1.xpose.msra.mxu0 0.0
        %983 = vmatprep.subr.mxu0 0.0
        %984 = vmatpush1.xpose.msra.mxu0 0.0
        %985 = vmatprep.subr.mxu0 0.0
        %986 = vmatpush1.xpose.msra.mxu0 0.0
        %987 = vmatprep.subr.mxu0 0.0
        %988 = vmatpush1.xpose.msra.mxu0 0.0
        %989 = vmatprep.subr.mxu0 0.0
        %990 = vmatpush1.xpose.msra.mxu0 0.0
        %991 = vmatprep.subr.mxu0 0.0
        %992 = vmatpush1.xpose.msra.mxu0 0.0
        %993 = vmatprep.subr.mxu0 0.0
        %994 = vmatpush1.xpose.msra.mxu0 0.0
        %995 = vmatprep.subr.mxu0 0.0
        %996 = vmatpush1.xpose.msra.mxu0 0.0
        %997 = vmatprep.mubr.f32.mxu0 0.0
        %998 = vmatmul.mubr.f32.gmra.mrb[0].mxu0 %v922
        %v999 = vpop.f32.mrb[0].mxu0
        %v1000 = vadd.f32 0.0, %v999
        %v1001 = vpop.f32.mrb[0].mxu0
        %1002 = vmatprep.mubr.f32.mxu0 0.0
        %1003 = vmatmul.mubr.f32.gmra.mrb[0].mxu0 %v925
        %v1004 = vpop.f32.mrb[0].mxu0
        %v1005 = vadd.f32 0.0, %v1004
        %v1006 = vpop.f32.mrb[0].mxu0
        %1007 = vdwg.mxu0
        %v1008 = vsel %vm311, %v391, -inf
        %1009 = vmax.xlane.f32.xlu0 %v1008
        %v1010 = vpop.xlane.xlu0 %1009
        %v1011 = vsel %vm311, %v396, -inf
        %1012 = vmax.xlane.f32.xlu0 %v1011
        %v1013 = vpop.xlane.xlu0 %1012
        %v1014 = vsel %vm311, %v478, -inf
        %1015 = vmax.xlane.f32.xlu0 %v1014
        %v1016 = vpop.xlane.xlu0 %1015
        %v1017 = vsel %vm311, %v483, -inf
        %1018 = vmax.xlane.f32.xlu0 %v1017
        %v1019 = vpop.xlane.xlu0 %1018
        %v1020 = vsel %vm311, %v565, -inf
        %1021 = vmax.xlane.f32.xlu0 %v1020
        %v1022 = vpop.xlane.xlu0 %1021
        %v1023 = vsel %vm311, %v570, -inf
        %1024 = vmax.xlane.f32.xlu0 %v1023
        %v1025 = vpop.xlane.xlu0 %1024
        %v1026 = vsel %vm311, %v652, -inf
        %1027 = vmax.xlane.f32.xlu0 %v1026
        %v1028 = vpop.xlane.xlu0 %1027
        %v1029 = vsel %vm311, %v657, -inf
        %1030 = vmax.xlane.f32.xlu0 %v1029
        %v1031 = vpop.xlane.xlu0 %1030
        %v1032 = vsel %vm311, %v739, -inf
        %1033 = vmax.xlane.f32.xlu0 %v1032
        %v1034 = vpop.xlane.xlu0 %1033
        %v1035 = vsel %vm311, %v744, -inf
        %1036 = vmax.xlane.f32.xlu0 %v1035
        %v1037 = vpop.xlane.xlu0 %1036
        %v1038 = vsel %vm311, %v826, -inf
        %1039 = vmax.xlane.f32.xlu0 %v1038
        %v1040 = vpop.xlane.xlu0 %1039
        %v1041 = vsel %vm311, %v831, -inf
        %1042 = vmax.xlane.f32.xlu0 %v1041
        %v1043 = vpop.xlane.xlu0 %1042
        %v1044 = vsel %vm311, %v913, -inf
        %1045 = vmax.xlane.f32.xlu0 %v1044
        %v1046 = vpop.xlane.xlu0 %1045
        %v1047 = vsel %vm311, %v918, -inf
        %1048 = vmax.xlane.f32.xlu0 %v1047
        %v1049 = vpop.xlane.xlu0 %1048
        %v1050 = vsel %vm311, %v1000, -inf
        %1051 = vmax.xlane.f32.xlu0 %v1050
        %v1052 = vpop.xlane.xlu0 %1051
        %v1053 = vsel %vm311, %v1005, -inf
        %1054 = vmax.xlane.f32.xlu0 %v1053
        %v1055 = vpop.xlane.xlu0 %1054
        %v1056 = vsub.f32 %v391, %v1010
        %v1057 = vsub.f32 %v396, %v1013
        %v1058 = vsub.f32 %v478, %v1016
        %v1059 = vsub.f32 %v483, %v1019
        %v1060 = vsub.f32 %v565, %v1022
        %v1061 = vsub.f32 %v570, %v1025
        %v1062 = vsub.f32 %v652, %v1028
        %v1063 = vsub.f32 %v657, %v1031
        %v1064 = vsub.f32 %v739, %v1034
        %v1065 = vsub.f32 %v744, %v1037
        %v1066 = vsub.f32 %v826, %v1040
        %v1067 = vsub.f32 %v831, %v1043
        %v1068 = vsub.f32 %v913, %v1046
        %v1069 = vsub.f32 %v918, %v1049
        %v1070 = vsub.f32 %v1000, %v1052
        %v1071 = vsub.f32 %v1005, %v1055
        %v1072 = vmul.f32 %v1056, 1.442695
        %v1073 = vpow.pop %v1072
        %v1074 = vmul.f32 %v1057, 1.442695
        %v1075 = vpow.pop %v1074
        %v1076 = vmul.f32 %v1058, 1.442695
        %v1077 = vpow.pop %v1076
        %v1078 = vmul.f32 %v1059, 1.442695
        %v1079 = vpow.pop %v1078
        %v1080 = vmul.f32 %v1060, 1.442695
        %v1081 = vpow.pop %v1080
        %v1082 = vmul.f32 %v1061, 1.442695
        %v1083 = vpow.pop %v1082
        %v1084 = vmul.f32 %v1062, 1.442695
        %v1085 = vpow.pop %v1084
        %v1086 = vmul.f32 %v1063, 1.442695
        %v1087 = vpow.pop %v1086
        %v1088 = vmul.f32 %v1064, 1.442695
        %v1089 = vpow.pop %v1088
        %v1090 = vmul.f32 %v1065, 1.442695
        %v1091 = vpow.pop %v1090
        %v1092 = vmul.f32 %v1066, 1.442695
        %v1093 = vpow.pop %v1092
        %v1094 = vmul.f32 %v1067, 1.442695
        %v1095 = vpow.pop %v1094
        %v1096 = vmul.f32 %v1068, 1.442695
        %v1097 = vpow.pop %v1096
        %v1098 = vmul.f32 %v1069, 1.442695
        %v1099 = vpow.pop %v1098
        %v1100 = vmul.f32 %v1070, 1.442695
        %v1101 = vpow.pop %v1100
        %v1102 = vmul.f32 %v1071, 1.442695
        %v1103 = vpow.pop %v1102
        %v1104 = vsel %vm311, %v1073, 0.0
        %1105 = vadd.xlane.f32.xlu0 %v1104
        %v1106 = vpop.xlane.xlu0 %1105
        %v1107 = vsel %vm311, %v1075, 0.0
        %1108 = vadd.xlane.f32.xlu0 %v1107
        %v1109 = vpop.xlane.xlu0 %1108
        %v1110 = vsel %vm311, %v1077, 0.0
        %1111 = vadd.xlane.f32.xlu0 %v1110
        %v1112 = vpop.xlane.xlu0 %1111
        %v1113 = vsel %vm311, %v1079, 0.0
        %1114 = vadd.xlane.f32.xlu0 %v1113
        %v1115 = vpop.xlane.xlu0 %1114
        %v1116 = vsel %vm311, %v1081, 0.0
        %1117 = vadd.xlane.f32.xlu0 %v1116
        %v1118 = vpop.xlane.xlu0 %1117
        %v1119 = vsel %vm311, %v1083, 0.0
        %1120 = vadd.xlane.f32.xlu0 %v1119
        %v1121 = vpop.xlane.xlu0 %1120
        %v1122 = vsel %vm311, %v1085, 0.0
        %1123 = vadd.xlane.f32.xlu0 %v1122
        %v1124 = vpop.xlane.xlu0 %1123
        %v1125 = vsel %vm311, %v1087, 0.0
        %1126 = vadd.xlane.f32.xlu0 %v1125
        %v1127 = vpop.xlane.xlu0 %1126
        %v1128 = vsel %vm311, %v1089, 0.0
        %1129 = vadd.xlane.f32.xlu0 %v1128
        %v1130 = vpop.xlane.xlu0 %1129
        %v1131 = vsel %vm311, %v1091, 0.0
        %1132 = vadd.xlane.f32.xlu0 %v1131
        %v1133 = vpop.xlane.xlu0 %1132
        %v1134 = vsel %vm311, %v1093, 0.0
        %1135 = vadd.xlane.f32.xlu0 %v1134
        %v1136 = vpop.xlane.xlu0 %1135
        %v1137 = vsel %vm311, %v1095, 0.0
        %1138 = vadd.xlane.f32.xlu0 %v1137
        %v1139 = vpop.xlane.xlu0 %1138
        %v1140 = vsel %vm311, %v1097, 0.0
        %1141 = vadd.xlane.f32.xlu0 %v1140
        %v1142 = vpop.xlane.xlu0 %1141
        %v1143 = vsel %vm311, %v1099, 0.0
        %1144 = vadd.xlane.f32.xlu0 %v1143
        %v1145 = vpop.xlane.xlu0 %1144
        %v1146 = vsel %vm311, %v1101, 0.0
        %1147 = vadd.xlane.f32.xlu0 %v1146
        %v1148 = vpop.xlane.xlu0 %1147
        %v1149 = vsel %vm311, %v1103, 0.0
        %1150 = vadd.xlane.f32.xlu0 %v1149
        %v1151 = vpop.xlane.xlu0 %1150
        %v1152 = vrcp.pop %v1106
        %v1153 = vrcp.pop %v1109
        %v1154 = vrcp.pop %v1112
        %v1155 = vrcp.pop %v1115
        %v1156 = vrcp.pop %v1118
        %v1157 = vrcp.pop %v1121
        %v1158 = vrcp.pop %v1124
        %v1159 = vrcp.pop %v1127
        %v1160 = vrcp.pop %v1130
        %v1161 = vrcp.pop %v1133
        %v1162 = vrcp.pop %v1136
        %v1163 = vrcp.pop %v1139
        %v1164 = vrcp.pop %v1142
        %v1165 = vrcp.pop %v1145
        %v1166 = vrcp.pop %v1148
        %v1167 = vrcp.pop %v1151
        %v1168 = vmul.f32 %v1073, %v1152
        %v1169 = vmul.f32 %v1075, %v1153
        %v1170 = vmul.f32 %v1077, %v1154
        %v1171 = vmul.f32 %v1079, %v1155
        %v1172 = vmul.f32 %v1081, %v1156
        %v1173 = vmul.f32 %v1083, %v1157
        %v1174 = vmul.f32 %v1085, %v1158
        %v1175 = vmul.f32 %v1087, %v1159
        %v1176 = vmul.f32 %v1089, %v1160
        %v1177 = vmul.f32 %v1091, %v1161
        %v1178 = vmul.f32 %v1093, %v1162
        %v1179 = vmul.f32 %v1095, %v1163
        %v1180 = vmul.f32 %v1097, %v1164
        %v1181 = vmul.f32 %v1099, %v1165
        %v1182 = vmul.f32 %v1101, %v1166
        %v1183 = vmul.f32 %v1103, %v1167
        %v1185 = vsel %vm311, %v1168, 0
        %v1188 = vsel %vm311, %v1169, 0
        %1190 = vmatprep.subr.mxu0 0.0
        %1191 = vmatpush1.msra.mxu0 %v295
        %1192 = vmatprep.subr.mxu0 0.0
        %1193 = vmatpush1.msra.mxu0 %v296
        %1194 = vmatprep.subr.mxu0 0.0
        %1195 = vmatpush1.msra.mxu0 0.0
        %1196 = vmatprep.subr.mxu0 0.0
        %1197 = vmatpush1.msra.mxu0 0.0
        %1198 = vmatprep.subr.mxu0 0.0
        %1199 = vmatpush1.msra.mxu0 0.0
        %1200 = vmatprep.subr.mxu0 0.0
        %1201 = vmatpush1.msra.mxu0 0.0
        %1202 = vmatprep.subr.mxu0 0.0
        %1203 = vmatpush1.msra.mxu0 0.0
        %1204 = vmatprep.subr.mxu0 0.0
        %1205 = vmatpush1.msra.mxu0 0.0
        %1206 = vmatprep.subr.mxu0 0.0
        %1207 = vmatpush1.msra.mxu0 0.0
        %1208 = vmatprep.subr.mxu0 0.0
        %1209 = vmatpush1.msra.mxu0 0.0
        %1210 = vmatprep.subr.mxu0 0.0
        %1211 = vmatpush1.msra.mxu0 0.0
        %1212 = vmatprep.subr.mxu0 0.0
        %1213 = vmatpush1.msra.mxu0 0.0
        %1214 = vmatprep.subr.mxu0 0.0
        %1215 = vmatpush1.msra.mxu0 0.0
        %1216 = vmatprep.subr.mxu0 0.0
        %1217 = vmatpush1.msra.mxu0 0.0
        %1218 = vmatprep.subr.mxu0 0.0
        %1219 = vmatpush1.msra.mxu0 0.0
        %1220 = vmatprep.subr.mxu0 0.0
        %1221 = vmatpush1.msra.mxu0 0.0
        %1222 = vmatprep.subr.mxu0 0.0
        %1223 = vmatpush1.msra.mxu0 0.0
        %1224 = vmatprep.subr.mxu0 0.0
        %1225 = vmatpush1.msra.mxu0 0.0
        %1226 = vmatprep.subr.mxu0 0.0
        %1227 = vmatpush1.msra.mxu0 0.0
        %1228 = vmatprep.subr.mxu0 0.0
        %1229 = vmatpush1.msra.mxu0 0.0
        %1230 = vmatprep.subr.mxu0 0.0
        %1231 = vmatpush1.msra.mxu0 0.0
        %1232 = vmatprep.subr.mxu0 0.0
        %1233 = vmatpush1.msra.mxu0 0.0
        %1234 = vmatprep.subr.mxu0 0.0
        %1235 = vmatpush1.msra.mxu0 0.0
        %1236 = vmatprep.subr.mxu0 0.0
        %1237 = vmatpush1.msra.mxu0 0.0
        %1238 = vmatprep.subr.mxu0 0.0
        %1239 = vmatpush1.msra.mxu0 0.0
        %1240 = vmatprep.subr.mxu0 0.0
        %1241 = vmatpush1.msra.mxu0 0.0
        %1242 = vmatprep.subr.mxu0 0.0
        %1243 = vmatpush1.msra.mxu0 0.0
        %1244 = vmatprep.subr.mxu0 0.0
        %1245 = vmatpush1.msra.mxu0 0.0
        %1246 = vmatprep.subr.mxu0 0.0
        %1247 = vmatpush1.msra.mxu0 0.0
        %1248 = vmatprep.subr.mxu0 0.0
        %1249 = vmatpush1.msra.mxu0 0.0
        %1250 = vmatprep.subr.mxu0 0.0
        %1251 = vmatpush1.msra.mxu0 0.0
        %1252 = vmatprep.subr.mxu0 0.0
        %1253 = vmatpush1.msra.mxu0 0.0
        %1254 = vmatprep.mubr.f32.mxu0 0.0
        %1255 = vmatmul.mubr.f32.gmra.mrb[0].mxu0 %v1185
        %v1256 = vpop.f32.mrb[0].mxu0
        %v1257 = vadd.f32 0.0, %v1256
        %v1258 = vpop.f32.mrb[0].mxu0
        %1259 = vmatprep.mubr.f32.mxu0 0.0
        %1260 = vmatmul.mubr.f32.gmra.mrb[0].mxu0 %v1188
        %v1261 = vpop.f32.mrb[0].mxu0
        %v1262 = vadd.f32 0.0, %v1261
        %v1263 = vpop.f32.mrb[0].mxu0
        %1264 = vdwg.mxu0
        %v1266 = vsel %vm311, %v1170, 0
        %v1269 = vsel %vm311, %v1171, 0
        %1271 = vmatprep.subr.mxu0 0.0
        %1272 = vmatpush1.msra.mxu0 %v297
        %1273 = vmatprep.subr.mxu0 0.0
        %1274 = vmatpush1.msra.mxu0 %v298
        %1275 = vmatprep.subr.mxu0 0.0
        %1276 = vmatpush1.msra.mxu0 0.0
        %1277 = vmatprep.subr.mxu0 0.0
        %1278 = vmatpush1.msra.mxu0 0.0
        %1279 = vmatprep.subr.mxu0 0.0
        %1280 = vmatpush1.msra.mxu0 0.0
        %1281 = vmatprep.subr.mxu0 0.0
        %1282 = vmatpush1.msra.mxu0 0.0
        %1283 = vmatprep.subr.mxu0 0.0
        %1284 = vmatpush1.msra.mxu0 0.0
        %1285 = vmatprep.subr.mxu0 0.0
        %1286 = vmatpush1.msra.mxu0 0.0
        %1287 = vmatprep.subr.mxu0 0.0
        %1288 = vmatpush1.msra.mxu0 0.0
        %1289 = vmatprep.subr.mxu0 0.0
        %1290 = vmatpush1.msra.mxu0 0.0
        %1291 = vmatprep.subr.mxu0 0.0
        %1292 = vmatpush1.msra.mxu0 0.0
        %1293 = vmatprep.subr.mxu0 0.0
        %1294 = vmatpush1.msra.mxu0 0.0
        %1295 = vmatprep.subr.mxu0 0.0
        %1296 = vmatpush1.msra.mxu0 0.0
        %1297 = vmatprep.subr.mxu0 0.0
        %1298 = vmatpush1.msra.mxu0 0.0
        %1299 = vmatprep.subr.mxu0 0.0
        %1300 = vmatpush1.msra.mxu0 0.0
        %1301 = vmatprep.subr.mxu0 0.0
        %1302 = vmatpush1.msra.mxu0 0.0
        %1303 = vmatprep.subr.mxu0 0.0
        %1304 = vmatpush1.msra.mxu0 0.0
        %1305 = vmatprep.subr.mxu0 0.0
        %1306 = vmatpush1.msra.mxu0 0.0
        %1307 = vmatprep.subr.mxu0 0.0
        %1308 = vmatpush1.msra.mxu0 0.0
        %1309 = vmatprep.subr.mxu0 0.0
        %1310 = vmatpush1.msra.mxu0 0.0
        %1311 = vmatprep.subr.mxu0 0.0
        %1312 = vmatpush1.msra.mxu0 0.0
        %1313 = vmatprep.subr.mxu0 0.0
        %1314 = vmatpush1.msra.mxu0 0.0
        %1315 = vmatprep.subr.mxu0 0.0
        %1316 = vmatpush1.msra.mxu0 0.0
        %1317 = vmatprep.subr.mxu0 0.0
        %1318 = vmatpush1.msra.mxu0 0.0
        %1319 = vmatprep.subr.mxu0 0.0
        %1320 = vmatpush1.msra.mxu0 0.0
        %1321 = vmatprep.subr.mxu0 0.0
        %1322 = vmatpush1.msra.mxu0 0.0
        %1323 = vmatprep.subr.mxu0 0.0
        %1324 = vmatpush1.msra.mxu0 0.0
        %1325 = vmatprep.subr.mxu0 0.0
        %1326 = vmatpush1.msra.mxu0 0.0
        %1327 = vmatprep.subr.mxu0 0.0
        %1328 = vmatpush1.msra.mxu0 0.0
        %1329 = vmatprep.subr.mxu0 0.0
        %1330 = vmatpush1.msra.mxu0 0.0
        %1331 = vmatprep.subr.mxu0 0.0
        %1332 = vmatpush1.msra.mxu0 0.0
        %1333 = vmatprep.subr.mxu0 0.0
        %1334 = vmatpush1.msra.mxu0 0.0
        %1335 = vmatprep.mubr.f32.mxu0 0.0
        %1336 = vmatmul.mubr.f32.gmra.mrb[0].mxu0 %v1266
        %v1337 = vpop.f32.mrb[0].mxu0
        %v1338 = vadd.f32 0.0, %v1337
        %v1339 = vpop.f32.mrb[0].mxu0
        %1340 = vmatprep.mubr.f32.mxu0 0.0
        %1341 = vmatmul.mubr.f32.gmra.mrb[0].mxu0 %v1269
        %v1342 = vpop.f32.mrb[0].mxu0
        %v1343 = vadd.f32 0.0, %v1342
        %v1344 = vpop.f32.mrb[0].mxu0
        %1345 = vdwg.mxu0
        %v1347 = vsel %vm311, %v1172, 0
        %v1350 = vsel %vm311, %v1173, 0
        %1352 = vmatprep.subr.mxu0 0.0
        %1353 = vmatpush1.msra.mxu0 %v299
        %1354 = vmatprep.subr.mxu0 0.0
        %1355 = vmatpush1.msra.mxu0 %v300
        %1356 = vmatprep.subr.mxu0 0.0
        %1357 = vmatpush1.msra.mxu0 0.0
        %1358 = vmatprep.subr.mxu0 0.0
        %1359 = vmatpush1.msra.mxu0 0.0
        %1360 = vmatprep.subr.mxu0 0.0
        %1361 = vmatpush1.msra.mxu0 0.0
        %1362 = vmatprep.subr.mxu0 0.0
        %1363 = vmatpush1.msra.mxu0 0.0
        %1364 = vmatprep.subr.mxu0 0.0
        %1365 = vmatpush1.msra.mxu0 0.0
        %1366 = vmatprep.subr.mxu0 0.0
        %1367 = vmatpush1.msra.mxu0 0.0
        %1368 = vmatprep.subr.mxu0 0.0
        %1369 = vmatpush1.msra.mxu0 0.0
        %1370 = vmatprep.subr.mxu0 0.0
        %1371 = vmatpush1.msra.mxu0 0.0
        %1372 = vmatprep.subr.mxu0 0.0
        %1373 = vmatpush1.msra.mxu0 0.0
        %1374 = vmatprep.subr.mxu0 0.0
        %1375 = vmatpush1.msra.mxu0 0.0
        %1376 = vmatprep.subr.mxu0 0.0
        %1377 = vmatpush1.msra.mxu0 0.0
        %1378 = vmatprep.subr.mxu0 0.0
        %1379 = vmatpush1.msra.mxu0 0.0
        %1380 = vmatprep.subr.mxu0 0.0
        %1381 = vmatpush1.msra.mxu0 0.0
        %1382 = vmatprep.subr.mxu0 0.0
        %1383 = vmatpush1.msra.mxu0 0.0
        %1384 = vmatprep.subr.mxu0 0.0
        %1385 = vmatpush1.msra.mxu0 0.0
        %1386 = vmatprep.subr.mxu0 0.0
        %1387 = vmatpush1.msra.mxu0 0.0
        %1388 = vmatprep.subr.mxu0 0.0
        %1389 = vmatpush1.msra.mxu0 0.0
        %1390 = vmatprep.subr.mxu0 0.0
        %1391 = vmatpush1.msra.mxu0 0.0
        %1392 = vmatprep.subr.mxu0 0.0
        %1393 = vmatpush1.msra.mxu0 0.0
        %1394 = vmatprep.subr.mxu0 0.0
        %1395 = vmatpush1.msra.mxu0 0.0
        %1396 = vmatprep.subr.mxu0 0.0
        %1397 = vmatpush1.msra.mxu0 0.0
        %1398 = vmatprep.subr.mxu0 0.0
        %1399 = vmatpush1.msra.mxu0 0.0
        %1400 = vmatprep.subr.mxu0 0.0
        %1401 = vmatpush1.msra.mxu0 0.0
        %1402 = vmatprep.subr.mxu0 0.0
        %1403 = vmatpush1.msra.mxu0 0.0
        %1404 = vmatprep.subr.mxu0 0.0
        %1405 = vmatpush1.msra.mxu0 0.0
        %1406 = vmatprep.subr.mxu0 0.0
        %1407 = vmatpush1.msra.mxu0 0.0
        %1408 = vmatprep.subr.mxu0 0.0
        %1409 = vmatpush1.msra.mxu0 0.0
        %1410 = vmatprep.subr.mxu0 0.0
        %1411 = vmatpush1.msra.mxu0 0.0
        %1412 = vmatprep.subr.mxu0 0.0
        %1413 = vmatpush1.msra.mxu0 0.0
        %1414 = vmatprep.subr.mxu0 0.0
        %1415 = vmatpush1.msra.mxu0 0.0
        %1416 = vmatprep.mubr.f32.mxu0 0.0
        %1417 = vmatmul.mubr.f32.gmra.mrb[0].mxu0 %v1347
        %v1418 = vpop.f32.mrb[0].mxu0
        %v1419 = vadd.f32 0.0, %v1418
        %v1420 = vpop.f32.mrb[0].mxu0
        %1421 = vmatprep.mubr.f32.mxu0 0.0
        %1422 = vmatmul.mubr.f32.gmra.mrb[0].mxu0 %v1350
        %v1423 = vpop.f32.mrb[0].mxu0
        %v1424 = vadd.f32 0.0, %v1423
        %v1425 = vpop.f32.mrb[0].mxu0
        %1426 = vdwg.mxu0
        %v1428 = vsel %vm311, %v1174, 0
        %v1431 = vsel %vm311, %v1175, 0
        %1433 = vmatprep.subr.mxu0 0.0
        %1434 = vmatpush1.msra.mxu0 %v301
        %1435 = vmatprep.subr.mxu0 0.0
        %1436 = vmatpush1.msra.mxu0 %v302
        %1437 = vmatprep.subr.mxu0 0.0
        %1438 = vmatpush1.msra.mxu0 0.0
        %1439 = vmatprep.subr.mxu0 0.0
        %1440 = vmatpush1.msra.mxu0 0.0
        %1441 = vmatprep.subr.mxu0 0.0
        %1442 = vmatpush1.msra.mxu0 0.0
        %1443 = vmatprep.subr.mxu0 0.0
        %1444 = vmatpush1.msra.mxu0 0.0
        %1445 = vmatprep.subr.mxu0 0.0
        %1446 = vmatpush1.msra.mxu0 0.0
        %1447 = vmatprep.subr.mxu0 0.0
        %1448 = vmatpush1.msra.mxu0 0.0
        %1449 = vmatprep.subr.mxu0 0.0
        %1450 = vmatpush1.msra.mxu0 0.0
        %1451 = vmatprep.subr.mxu0 0.0
        %1452 = vmatpush1.msra.mxu0 0.0
        %1453 = vmatprep.subr.mxu0 0.0
        %1454 = vmatpush1.msra.mxu0 0.0
        %1455 = vmatprep.subr.mxu0 0.0
        %1456 = vmatpush1.msra.mxu0 0.0
        %1457 = vmatprep.subr.mxu0 0.0
        %1458 = vmatpush1.msra.mxu0 0.0
        %1459 = vmatprep.subr.mxu0 0.0
        %1460 = vmatpush1.msra.mxu0 0.0
        %1461 = vmatprep.subr.mxu0 0.0
        %1462 = vmatpush1.msra.mxu0 0.0
        %1463 = vmatprep.subr.mxu0 0.0
        %1464 = vmatpush1.msra.mxu0 0.0
        %1465 = vmatprep.subr.mxu0 0.0
        %1466 = vmatpush1.msra.mxu0 0.0
        %1467 = vmatprep.subr.mxu0 0.0
        %1468 = vmatpush1.msra.mxu0 0.0
        %1469 = vmatprep.subr.mxu0 0.0
        %1470 = vmatpush1.msra.mxu0 0.0
        %1471 = vmatprep.subr.mxu0 0.0
        %1472 = vmatpush1.msra.mxu0 0.0
        %1473 = vmatprep.subr.mxu0 0.0
        %1474 = vmatpush1.msra.mxu0 0.0
        %1475 = vmatprep.subr.mxu0 0.0
        %1476 = vmatpush1.msra.mxu0 0.0
        %1477 = vmatprep.subr.mxu0 0.0
        %1478 = vmatpush1.msra.mxu0 0.0
        %1479 = vmatprep.subr.mxu0 0.0
        %1480 = vmatpush1.msra.mxu0 0.0
        %1481 = vmatprep.subr.mxu0 0.0
        %1482 = vmatpush1.msra.mxu0 0.0
        %1483 = vmatprep.subr.mxu0 0.0
        %1484 = vmatpush1.msra.mxu0 0.0
        %1485 = vmatprep.subr.mxu0 0.0
        %1486 = vmatpush1.msra.mxu0 0.0
        %1487 = vmatprep.subr.mxu0 0.0
        %1488 = vmatpush1.msra.mxu0 0.0
        %1489 = vmatprep.subr.mxu0 0.0
        %1490 = vmatpush1.msra.mxu0 0.0
        %1491 = vmatprep.subr.mxu0 0.0
        %1492 = vmatpush1.msra.mxu0 0.0
        %1493 = vmatprep.subr.mxu0 0.0
        %1494 = vmatpush1.msra.mxu0 0.0
        %1495 = vmatprep.subr.mxu0 0.0
        %1496 = vmatpush1.msra.mxu0 0.0
        %1497 = vmatprep.mubr.f32.mxu0 0.0
        %1498 = vmatmul.mubr.f32.gmra.mrb[0].mxu0 %v1428
        %v1499 = vpop.f32.mrb[0].mxu0
        %v1500 = vadd.f32 0.0, %v1499
        %v1501 = vpop.f32.mrb[0].mxu0
        %1502 = vmatprep.mubr.f32.mxu0 0.0
        %1503 = vmatmul.mubr.f32.gmra.mrb[0].mxu0 %v1431
        %v1504 = vpop.f32.mrb[0].mxu0
        %v1505 = vadd.f32 0.0, %v1504
        %v1506 = vpop.f32.mrb[0].mxu0
        %1507 = vdwg.mxu0
        %v1509 = vsel %vm311, %v1176, 0
        %v1512 = vsel %vm311, %v1177, 0
        %1514 = vmatprep.subr.mxu0 0.0
        %1515 = vmatpush1.msra.mxu0 %v303
        %1516 = vmatprep.subr.mxu0 0.0
        %1517 = vmatpush1.msra.mxu0 %v304
        %1518 = vmatprep.subr.mxu0 0.0
        %1519 = vmatpush1.msra.mxu0 0.0
        %1520 = vmatprep.subr.mxu0 0.0
        %1521 = vmatpush1.msra.mxu0 0.0
        %1522 = vmatprep.subr.mxu0 0.0
        %1523 = vmatpush1.msra.mxu0 0.0
        %1524 = vmatprep.subr.mxu0 0.0
        %1525 = vmatpush1.msra.mxu0 0.0
        %1526 = vmatprep.subr.mxu0 0.0
        %1527 = vmatpush1.msra.mxu0 0.0
        %1528 = vmatprep.subr.mxu0 0.0
        %1529 = vmatpush1.msra.mxu0 0.0
        %1530 = vmatprep.subr.mxu0 0.0
        %1531 = vmatpush1.msra.mxu0 0.0
        %1532 = vmatprep.subr.mxu0 0.0
        %1533 = vmatpush1.msra.mxu0 0.0
        %1534 = vmatprep.subr.mxu0 0.0
        %1535 = vmatpush1.msra.mxu0 0.0
        %1536 = vmatprep.subr.mxu0 0.0
        %1537 = vmatpush1.msra.mxu0 0.0
        %1538 = vmatprep.subr.mxu0 0.0
        %1539 = vmatpush1.msra.mxu0 0.0
        %1540 = vmatprep.subr.mxu0 0.0
        %1541 = vmatpush1.msra.mxu0 0.0
        %1542 = vmatprep.subr.mxu0 0.0
        %1543 = vmatpush1.msra.mxu0 0.0
        %1544 = vmatprep.subr.mxu0 0.0
        %1545 = vmatpush1.msra.mxu0 0.0
        %1546 = vmatprep.subr.mxu0 0.0
        %1547 = vmatpush1.msra.mxu0 0.0
        %1548 = vmatprep.subr.mxu0 0.0
        %1549 = vmatpush1.msra.mxu0 0.0
        %1550 = vmatprep.subr.mxu0 0.0
        %1551 = vmatpush1.msra.mxu0 0.0
        %1552 = vmatprep.subr.mxu0 0.0
        %1553 = vmatpush1.msra.mxu0 0.0
        %1554 = vmatprep.subr.mxu0 0.0
        %1555 = vmatpush1.msra.mxu0 0.0
        %1556 = vmatprep.subr.mxu0 0.0
        %1557 = vmatpush1.msra.mxu0 0.0
        %1558 = vmatprep.subr.mxu0 0.0
        %1559 = vmatpush1.msra.mxu0 0.0
        %1560 = vmatprep.subr.mxu0 0.0
        %1561 = vmatpush1.msra.mxu0 0.0
        %1562 = vmatprep.subr.mxu0 0.0
        %1563 = vmatpush1.msra.mxu0 0.0
        %1564 = vmatprep.subr.mxu0 0.0
        %1565 = vmatpush1.msra.mxu0 0.0
        %1566 = vmatprep.subr.mxu0 0.0
        %1567 = vmatpush1.msra.mxu0 0.0
        %1568 = vmatprep.subr.mxu0 0.0
        %1569 = vmatpush1.msra.mxu0 0.0
        %1570 = vmatprep.subr.mxu0 0.0
        %1571 = vmatpush1.msra.mxu0 0.0
        %1572 = vmatprep.subr.mxu0 0.0
        %1573 = vmatpush1.msra.mxu0 0.0
        %1574 = vmatprep.subr.mxu0 0.0
        %1575 = vmatpush1.msra.mxu0 0.0
        %1576 = vmatprep.subr.mxu0 0.0
        %1577 = vmatpush1.msra.mxu0 0.0
        %1578 = vmatprep.mubr.f32.mxu0 0.0
        %1579 = vmatmul.mubr.f32.gmra.mrb[0].mxu0 %v1509
        %v1580 = vpop.f32.mrb[0].mxu0
        %v1581 = vadd.f32 0.0, %v1580
        %v1582 = vpop.f32.mrb[0].mxu0
        %1583 = vmatprep.mubr.f32.mxu0 0.0
        %1584 = vmatmul.mubr.f32.gmra.mrb[0].mxu0 %v1512
        %v1585 = vpop.f32.mrb[0].mxu0
        %v1586 = vadd.f32 0.0, %v1585
        %v1587 = vpop.f32.mrb[0].mxu0
        %1588 = vdwg.mxu0
        %v1590 = vsel %vm311, %v1178, 0
        %v1593 = vsel %vm311, %v1179, 0
        %1595 = vmatprep.subr.mxu0 0.0
        %1596 = vmatpush1.msra.mxu0 %v305
        %1597 = vmatprep.subr.mxu0 0.0
        %1598 = vmatpush1.msra.mxu0 %v306
        %1599 = vmatprep.subr.mxu0 0.0
        %1600 = vmatpush1.msra.mxu0 0.0
        %1601 = vmatprep.subr.mxu0 0.0
        %1602 = vmatpush1.msra.mxu0 0.0
        %1603 = vmatprep.subr.mxu0 0.0
        %1604 = vmatpush1.msra.mxu0 0.0
        %1605 = vmatprep.subr.mxu0 0.0
        %1606 = vmatpush1.msra.mxu0 0.0
        %1607 = vmatprep.subr.mxu0 0.0
        %1608 = vmatpush1.msra.mxu0 0.0
        %1609 = vmatprep.subr.mxu0 0.0
        %1610 = vmatpush1.msra.mxu0 0.0
        %1611 = vmatprep.subr.mxu0 0.0
        %1612 = vmatpush1.msra.mxu0 0.0
        %1613 = vmatprep.subr.mxu0 0.0
        %1614 = vmatpush1.msra.mxu0 0.0
        %1615 = vmatprep.subr.mxu0 0.0
        %1616 = vmatpush1.msra.mxu0 0.0
        %1617 = vmatprep.subr.mxu0 0.0
        %1618 = vmatpush1.msra.mxu0 0.0
        %1619 = vmatprep.subr.mxu0 0.0
        %1620 = vmatpush1.msra.mxu0 0.0
        %1621 = vmatprep.subr.mxu0 0.0
        %1622 = vmatpush1.msra.mxu0 0.0
        %1623 = vmatprep.subr.mxu0 0.0
        %1624 = vmatpush1.msra.mxu0 0.0
        %1625 = vmatprep.subr.mxu0 0.0
        %1626 = vmatpush1.msra.mxu0 0.0
        %1627 = vmatprep.subr.mxu0 0.0
        %1628 = vmatpush1.msra.mxu0 0.0
        %1629 = vmatprep.subr.mxu0 0.0
        %1630 = vmatpush1.msra.mxu0 0.0
        %1631 = vmatprep.subr.mxu0 0.0
        %1632 = vmatpush1.msra.mxu0 0.0
        %1633 = vmatprep.subr.mxu0 0.0
        %1634 = vmatpush1.msra.mxu0 0.0
        %1635 = vmatprep.subr.mxu0 0.0
        %1636 = vmatpush1.msra.mxu0 0.0
        %1637 = vmatprep.subr.mxu0 0.0
        %1638 = vmatpush1.msra.mxu0 0.0
        %1639 = vmatprep.subr.mxu0 0.0
        %1640 = vmatpush1.msra.mxu0 0.0
        %1641 = vmatprep.subr.mxu0 0.0
        %1642 = vmatpush1.msra.mxu0 0.0
        %1643 = vmatprep.subr.mxu0 0.0
        %1644 = vmatpush1.msra.mxu0 0.0
        %1645 = vmatprep.subr.mxu0 0.0
        %1646 = vmatpush1.msra.mxu0 0.0
        %1647 = vmatprep.subr.mxu0 0.0
        %1648 = vmatpush1.msra.mxu0 0.0
        %1649 = vmatprep.subr.mxu0 0.0
        %1650 = vmatpush1.msra.mxu0 0.0
        %1651 = vmatprep.subr.mxu0 0.0
        %1652 = vmatpush1.msra.mxu0 0.0
        %1653 = vmatprep.subr.mxu0 0.0
        %1654 = vmatpush1.msra.mxu0 0.0
        %1655 = vmatprep.subr.mxu0 0.0
        %1656 = vmatpush1.msra.mxu0 0.0
        %1657 = vmatprep.subr.mxu0 0.0
        %1658 = vmatpush1.msra.mxu0 0.0
        %1659 = vmatprep.mubr.f32.mxu0 0.0
        %1660 = vmatmul.mubr.f32.gmra.mrb[0].mxu0 %v1590
        %v1661 = vpop.f32.mrb[0].mxu0
        %v1662 = vadd.f32 0.0, %v1661
        %v1663 = vpop.f32.mrb[0].mxu0
        %1664 = vmatprep.mubr.f32.mxu0 0.0
        %1665 = vmatmul.mubr.f32.gmra.mrb[0].mxu0 %v1593
        %v1666 = vpop.f32.mrb[0].mxu0
        %v1667 = vadd.f32 0.0, %v1666
        %v1668 = vpop.f32.mrb[0].mxu0
        %1669 = vdwg.mxu0
        %v1671 = vsel %vm311, %v1180, 0
        %v1674 = vsel %vm311, %v1181, 0
        %1676 = vmatprep.subr.mxu0 0.0
        %1677 = vmatpush1.msra.mxu0 %v307
        %1678 = vmatprep.subr.mxu0 0.0
        %1679 = vmatpush1.msra.mxu0 %v308
        %1680 = vmatprep.subr.mxu0 0.0
        %1681 = vmatpush1.msra.mxu0 0.0
        %1682 = vmatprep.subr.mxu0 0.0
        %1683 = vmatpush1.msra.mxu0 0.0
        %1684 = vmatprep.subr.mxu0 0.0
        %1685 = vmatpush1.msra.mxu0 0.0
        %1686 = vmatprep.subr.mxu0 0.0
        %1687 = vmatpush1.msra.mxu0 0.0
        %1688 = vmatprep.subr.mxu0 0.0
        %1689 = vmatpush1.msra.mxu0 0.0
        %1690 = vmatprep.subr.mxu0 0.0
        %1691 = vmatpush1.msra.mxu0 0.0
        %1692 = vmatprep.subr.mxu0 0.0
        %1693 = vmatpush1.msra.mxu0 0.0
        %1694 = vmatprep.subr.mxu0 0.0
        %1695 = vmatpush1.msra.mxu0 0.0
        %1696 = vmatprep.subr.mxu0 0.0
        %1697 = vmatpush1.msra.mxu0 0.0
        %1698 = vmatprep.subr.mxu0 0.0
        %1699 = vmatpush1.msra.mxu0 0.0
        %1700 = vmatprep.subr.mxu0 0.0
        %1701 = vmatpush1.msra.mxu0 0.0
        %1702 = vmatprep.subr.mxu0 0.0
        %1703 = vmatpush1.msra.mxu0 0.0
        %1704 = vmatprep.subr.mxu0 0.0
        %1705 = vmatpush1.msra.mxu0 0.0
        %1706 = vmatprep.subr.mxu0 0.0
        %1707 = vmatpush1.msra.mxu0 0.0
        %1708 = vmatprep.subr.mxu0 0.0
        %1709 = vmatpush1.msra.mxu0 0.0
        %1710 = vmatprep.subr.mxu0 0.0
        %1711 = vmatpush1.msra.mxu0 0.0
        %1712 = vmatprep.subr.mxu0 0.0
        %1713 = vmatpush1.msra.mxu0 0.0
        %1714 = vmatprep.subr.mxu0 0.0
        %1715 = vmatpush1.msra.mxu0 0.0
        %1716 = vmatprep.subr.mxu0 0.0
        %1717 = vmatpush1.msra.mxu0 0.0
        %1718 = vmatprep.subr.mxu0 0.0
        %1719 = vmatpush1.msra.mxu0 0.0
        %1720 = vmatprep.subr.mxu0 0.0
        %1721 = vmatpush1.msra.mxu0 0.0
        %1722 = vmatprep.subr.mxu0 0.0
        %1723 = vmatpush1.msra.mxu0 0.0
        %1724 = vmatprep.subr.mxu0 0.0
        %1725 = vmatpush1.msra.mxu0 0.0
        %1726 = vmatprep.subr.mxu0 0.0
        %1727 = vmatpush1.msra.mxu0 0.0
        %1728 = vmatprep.subr.mxu0 0.0
        %1729 = vmatpush1.msra.mxu0 0.0
        %1730 = vmatprep.subr.mxu0 0.0
        %1731 = vmatpush1.msra.mxu0 0.0
        %1732 = vmatprep.subr.mxu0 0.0
        %1733 = vmatpush1.msra.mxu0 0.0
        %1734 = vmatprep.subr.mxu0 0.0
        %1735 = vmatpush1.msra.mxu0 0.0
        %1736 = vmatprep.subr.mxu0 0.0
        %1737 = vmatpush1.msra.mxu0 0.0
        %1738 = vmatprep.subr.mxu0 0.0
        %1739 = vmatpush1.msra.mxu0 0.0
        %1740 = vmatprep.mubr.f32.mxu0 0.0
        %1741 = vmatmul.mubr.f32.gmra.mrb[0].mxu0 %v1671
        %v1742 = vpop.f32.mrb[0].mxu0
        %v1743 = vadd.f32 0.0, %v1742
        %v1744 = vpop.f32.mrb[0].mxu0
        %1745 = vmatprep.mubr.f32.mxu0 0.0
        %1746 = vmatmul.mubr.f32.gmra.mrb[0].mxu0 %v1674
        %v1747 = vpop.f32.mrb[0].mxu0
        %v1748 = vadd.f32 0.0, %v1747
        %v1749 = vpop.f32.mrb[0].mxu0
        %1750 = vdwg.mxu0
        %v1752 = vsel %vm311, %v1182, 0
        %v1755 = vsel %vm311, %v1183, 0
        %1757 = vmatprep.subr.mxu0 0.0
        %1758 = vmatpush1.msra.mxu0 %v309
        %1759 = vmatprep.subr.mxu0 0.0
        %1760 = vmatpush1.msra.mxu0 %v310
        %1761 = vmatprep.subr.mxu0 0.0
        %1762 = vmatpush1.msra.mxu0 0.0
        %1763 = vmatprep.subr.mxu0 0.0
        %1764 = vmatpush1.msra.mxu0 0.0
        %1765 = vmatprep.subr.mxu0 0.0
        %1766 = vmatpush1.msra.mxu0 0.0
        %1767 = vmatprep.subr.mxu0 0.0
        %1768 = vmatpush1.msra.mxu0 0.0
        %1769 = vmatprep.subr.mxu0 0.0
        %1770 = vmatpush1.msra.mxu0 0.0
        %1771 = vmatprep.subr.mxu0 0.0
        %1772 = vmatpush1.msra.mxu0 0.0
        %1773 = vmatprep.subr.mxu0 0.0
        %1774 = vmatpush1.msra.mxu0 0.0
        %1775 = vmatprep.subr.mxu0 0.0
        %1776 = vmatpush1.msra.mxu0 0.0
        %1777 = vmatprep.subr.mxu0 0.0
        %1778 = vmatpush1.msra.mxu0 0.0
        %1779 = vmatprep.subr.mxu0 0.0
        %1780 = vmatpush1.msra.mxu0 0.0
        %1781 = vmatprep.subr.mxu0 0.0
        %1782 = vmatpush1.msra.mxu0 0.0
        %1783 = vmatprep.subr.mxu0 0.0
        %1784 = vmatpush1.msra.mxu0 0.0
        %1785 = vmatprep.subr.mxu0 0.0
        %1786 = vmatpush1.msra.mxu0 0.0
        %1787 = vmatprep.subr.mxu0 0.0
        %1788 = vmatpush1.msra.mxu0 0.0
        %1789 = vmatprep.subr.mxu0 0.0
        %1790 = vmatpush1.msra.mxu0 0.0
        %1791 = vmatprep.subr.mxu0 0.0
        %1792 = vmatpush1.msra.mxu0 0.0
        %1793 = vmatprep.subr.mxu0 0.0
        %1794 = vmatpush1.msra.mxu0 0.0
        %1795 = vmatprep.subr.mxu0 0.0
        %1796 = vmatpush1.msra.mxu0 0.0
        %1797 = vmatprep.subr.mxu0 0.0
        %1798 = vmatpush1.msra.mxu0 0.0
        %1799 = vmatprep.subr.mxu0 0.0
        %1800 = vmatpush1.msra.mxu0 0.0
        %1801 = vmatprep.subr.mxu0 0.0
        %1802 = vmatpush1.msra.mxu0 0.0
        %1803 = vmatprep.subr.mxu0 0.0
        %1804 = vmatpush1.msra.mxu0 0.0
        %1805 = vmatprep.subr.mxu0 0.0
        %1806 = vmatpush1.msra.mxu0 0.0
        %1807 = vmatprep.subr.mxu0 0.0
        %1808 = vmatpush1.msra.mxu0 0.0
        %1809 = vmatprep.subr.mxu0 0.0
        %1810 = vmatpush1.msra.mxu0 0.0
        %1811 = vmatprep.subr.mxu0 0.0
        %1812 = vmatpush1.msra.mxu0 0.0
        %1813 = vmatprep.subr.mxu0 0.0
        %1814 = vmatpush1.msra.mxu0 0.0
        %1815 = vmatprep.subr.mxu0 0.0
        %1816 = vmatpush1.msra.mxu0 0.0
        %1817 = vmatprep.subr.mxu0 0.0
        %1818 = vmatpush1.msra.mxu0 0.0
        %1819 = vmatprep.subr.mxu0 0.0
        %1820 = vmatpush1.msra.mxu0 0.0
        %1821 = vmatprep.mubr.f32.mxu0 0.0
        %1822 = vmatmul.mubr.f32.gmra.mrb[0].mxu0 %v1752
        %v1823 = vpop.f32.mrb[0].mxu0
        %v1824 = vadd.f32 0.0, %v1823
        %v1825 = vpop.f32.mrb[0].mxu0
        %1826 = vmatprep.mubr.f32.mxu0 0.0
        %1827 = vmatmul.mubr.f32.gmra.mrb[0].mxu0 %v1755
        %v1828 = vpop.f32.mrb[0].mxu0
        %v1829 = vadd.f32 0.0, %v1828
        %v1830 = vpop.f32.mrb[0].mxu0
        %1831 = vdwg.mxu0
        %v1832 = vld [vmem:[%s3] sm:$0xff]
        %v1833 = vld [vmem:[%s3 + $0x8] sm:$0xff]
        %v1834 = vld [vmem:[%s3 + $0x10] sm:$0xff]
        %v1835 = vld [vmem:[%s3 + $0x18] sm:$0xff]
        %v1836 = vld [vmem:[%s3 + $0x20] sm:$0xff]
        %v1837 = vld [vmem:[%s3 + $0x28] sm:$0xff]
        %v1838 = vld [vmem:[%s3 + $0x30] sm:$0xff]
        %v1839 = vld [vmem:[%s3 + $0x38] sm:$0xff]
        %v1840 = vld [vmem:[%s3 + $0x40] sm:$0xff]
        %v1841 = vld [vmem:[%s3 + $0x48] sm:$0xff]
        %v1842 = vld [vmem:[%s3 + $0x50] sm:$0xff]
        %v1843 = vld [vmem:[%s3 + $0x58] sm:$0xff]
        %v1844 = vld [vmem:[%s3 + $0x60] sm:$0xff]
        %v1845 = vld [vmem:[%s3 + $0x68] sm:$0xff]
        %v1846 = vld [vmem:[%s3 + $0x70] sm:$0xff]
        %v1847 = vld [vmem:[%s3 + $0x78] sm:$0xff]
        %v1849 = vsel %vm311, %v1257, 0
        %v1852 = vsel %vm311, %v1262, 0
        %1854 = vmatprep.subr.mxu0 0.0
        %1855 = vmatpush1.msra.mxu0 %v1832
        %1856 = vmatprep.subr.mxu0 0.0
        %1857 = vmatpush1.msra.mxu0 %v1833
        %1858 = vmatprep.subr.mxu0 0.0
        %1859 = vmatpush1.msra.mxu0 0.0
        %1860 = vmatprep.subr.mxu0 0.0
        %1861 = vmatpush1.msra.mxu0 0.0
        %1862 = vmatprep.subr.mxu0 0.0
        %1863 = vmatpush1.msra.mxu0 0.0
        %1864 = vmatprep.subr.mxu0 0.0
        %1865 = vmatpush1.msra.mxu0 0.0
        %1866 = vmatprep.subr.mxu0 0.0
        %1867 = vmatpush1.msra.mxu0 0.0
        %1868 = vmatprep.subr.mxu0 0.0
        %1869 = vmatpush1.msra.mxu0 0.0
        %1870 = vmatprep.subr.mxu0 0.0
        %1871 = vmatpush1.msra.mxu0 0.0
        %1872 = vmatprep.subr.mxu0 0.0
        %1873 = vmatpush1.msra.mxu0 0.0
        %1874 = vmatprep.subr.mxu0 0.0
        %1875 = vmatpush1.msra.mxu0 0.0
        %1876 = vmatprep.subr.mxu0 0.0
        %1877 = vmatpush1.msra.mxu0 0.0
        %1878 = vmatprep.subr.mxu0 0.0
        %1879 = vmatpush1.msra.mxu0 0.0
        %1880 = vmatprep.subr.mxu0 0.0
        %1881 = vmatpush1.msra.mxu0 0.0
        %1882 = vmatprep.subr.mxu0 0.0
        %1883 = vmatpush1.msra.mxu0 0.0
        %1884 = vmatprep.subr.mxu0 0.0
        %1885 = vmatpush1.msra.mxu0 0.0
        %1886 = vmatprep.subr.mxu0 0.0
        %1887 = vmatpush1.msra.mxu0 0.0
        %1888 = vmatprep.subr.mxu0 0.0
        %1889 = vmatpush1.msra.mxu0 0.0
        %1890 = vmatprep.subr.mxu0 0.0
        %1891 = vmatpush1.msra.mxu0 0.0
        %1892 = vmatprep.subr.mxu0 0.0
        %1893 = vmatpush1.msra.mxu0 0.0
        %1894 = vmatprep.subr.mxu0 0.0
        %1895 = vmatpush1.msra.mxu0 0.0
        %1896 = vmatprep.subr.mxu0 0.0
        %1897 = vmatpush1.msra.mxu0 0.0
        %1898 = vmatprep.subr.mxu0 0.0
        %1899 = vmatpush1.msra.mxu0 0.0
        %1900 = vmatprep.subr.mxu0 0.0
        %1901 = vmatpush1.msra.mxu0 0.0
        %1902 = vmatprep.subr.mxu0 0.0
        %1903 = vmatpush1.msra.mxu0 0.0
        %1904 = vmatprep.subr.mxu0 0.0
        %1905 = vmatpush1.msra.mxu0 0.0
        %1906 = vmatprep.subr.mxu0 0.0
        %1907 = vmatpush1.msra.mxu0 0.0
        %1908 = vmatprep.subr.mxu0 0.0
        %1909 = vmatpush1.msra.mxu0 0.0
        %1910 = vmatprep.subr.mxu0 0.0
        %1911 = vmatpush1.msra.mxu0 0.0
        %1912 = vmatprep.subr.mxu0 0.0
        %1913 = vmatpush1.msra.mxu0 0.0
        %1914 = vmatprep.subr.mxu0 0.0
        %1915 = vmatpush1.msra.mxu0 0.0
        %1916 = vmatprep.subr.mxu0 0.0
        %1917 = vmatpush1.msra.mxu0 0.0
        %1918 = vmatprep.mubr.f32.mxu0 0.0
        %1919 = vmatmul.mubr.f32.gmra.mrb[0].mxu0 %v1849
        %v1920 = vpop.f32.mrb[0].mxu0
        %v1921 = vadd.f32 0.0, %v1920
        %v1922 = vpop.f32.mrb[0].mxu0
        %1923 = vmatprep.mubr.f32.mxu0 0.0
        %1924 = vmatmul.mubr.f32.gmra.mrb[0].mxu0 %v1852
        %v1925 = vpop.f32.mrb[0].mxu0
        %v1926 = vadd.f32 0.0, %v1925
        %v1927 = vpop.f32.mrb[0].mxu0
        %1928 = vdwg.mxu0
        %v1930 = vsel %vm311, %v1338, 0
        %v1933 = vsel %vm311, %v1343, 0
        %1935 = vmatprep.subr.mxu0 0.0
        %1936 = vmatpush1.msra.mxu0 %v1834
        %1937 = vmatprep.subr.mxu0 0.0
        %1938 = vmatpush1.msra.mxu0 %v1835
        %1939 = vmatprep.subr.mxu0 0.0
        %1940 = vmatpush1.msra.mxu0 0.0
        %1941 = vmatprep.subr.mxu0 0.0
        %1942 = vmatpush1.msra.mxu0 0.0
        %1943 = vmatprep.subr.mxu0 0.0
        %1944 = vmatpush1.msra.mxu0 0.0
        %1945 = vmatprep.subr.mxu0 0.0
        %1946 = vmatpush1.msra.mxu0 0.0
        %1947 = vmatprep.subr.mxu0 0.0
        %1948 = vmatpush1.msra.mxu0 0.0
        %1949 = vmatprep.subr.mxu0 0.0
        %1950 = vmatpush1.msra.mxu0 0.0
        %1951 = vmatprep.subr.mxu0 0.0
        %1952 = vmatpush1.msra.mxu0 0.0
        %1953 = vmatprep.subr.mxu0 0.0
        %1954 = vmatpush1.msra.mxu0 0.0
        %1955 = vmatprep.subr.mxu0 0.0
        %1956 = vmatpush1.msra.mxu0 0.0
        %1957 = vmatprep.subr.mxu0 0.0
        %1958 = vmatpush1.msra.mxu0 0.0
        %1959 = vmatprep.subr.mxu0 0.0
        %1960 = vmatpush1.msra.mxu0 0.0
        %1961 = vmatprep.subr.mxu0 0.0
        %1962 = vmatpush1.msra.mxu0 0.0
        %1963 = vmatprep.subr.mxu0 0.0
        %1964 = vmatpush1.msra.mxu0 0.0
        %1965 = vmatprep.subr.mxu0 0.0
        %1966 = vmatpush1.msra.mxu0 0.0
        %1967 = vmatprep.subr.mxu0 0.0
        %1968 = vmatpush1.msra.mxu0 0.0
        %1969 = vmatprep.subr.mxu0 0.0
        %1970 = vmatpush1.msra.mxu0 0.0
        %1971 = vmatprep.subr.mxu0 0.0
        %1972 = vmatpush1.msra.mxu0 0.0
        %1973 = vmatprep.subr.mxu0 0.0
        %1974 = vmatpush1.msra.mxu0 0.0
        %1975 = vmatprep.subr.mxu0 0.0
        %1976 = vmatpush1.msra.mxu0 0.0
        %1977 = vmatprep.subr.mxu0 0.0
        %1978 = vmatpush1.msra.mxu0 0.0
        %1979 = vmatprep.subr.mxu0 0.0
        %1980 = vmatpush1.msra.mxu0 0.0
        %1981 = vmatprep.subr.mxu0 0.0
        %1982 = vmatpush1.msra.mxu0 0.0
        %1983 = vmatprep.subr.mxu0 0.0
        %1984 = vmatpush1.msra.mxu0 0.0
        %1985 = vmatprep.subr.mxu0 0.0
        %1986 = vmatpush1.msra.mxu0 0.0
        %1987 = vmatprep.subr.mxu0 0.0
        %1988 = vmatpush1.msra.mxu0 0.0
        %1989 = vmatprep.subr.mxu0 0.0
        %1990 = vmatpush1.msra.mxu0 0.0
        %1991 = vmatprep.subr.mxu0 0.0
        %1992 = vmatpush1.msra.mxu0 0.0
        %1993 = vmatprep.subr.mxu0 0.0
        %1994 = vmatpush1.msra.mxu0 0.0
        %1995 = vmatprep.subr.mxu0 0.0
        %1996 = vmatpush1.msra.mxu0 0.0
        %1997 = vmatprep.subr.mxu0 0.0
        %1998 = vmatpush1.msra.mxu0 0.0
        %1999 = vmatprep.mubr.f32.mxu0 0.0
        %2000 = vmatmul.mubr.f32.gmra.mrb[0].mxu0 %v1930
        %v2001 = vpop.f32.mrb[0].mxu0
        %v2002 = vadd.f32 0.0, %v2001
        %v2003 = vpop.f32.mrb[0].mxu0
        %2004 = vmatprep.mubr.f32.mxu0 0.0
        %2005 = vmatmul.mubr.f32.gmra.mrb[0].mxu0 %v1933
        %v2006 = vpop.f32.mrb[0].mxu0
        %v2007 = vadd.f32 0.0, %v2006
        %v2008 = vpop.f32.mrb[0].mxu0
        %2009 = vdwg.mxu0
        %v2011 = vsel %vm311, %v1419, 0
        %v2014 = vsel %vm311, %v1424, 0
        %2016 = vmatprep.subr.mxu0 0.0
        %2017 = vmatpush1.msra.mxu0 %v1836
        %2018 = vmatprep.subr.mxu0 0.0
        %2019 = vmatpush1.msra.mxu0 %v1837
        %2020 = vmatprep.subr.mxu0 0.0
        %2021 = vmatpush1.msra.mxu0 0.0
        %2022 = vmatprep.subr.mxu0 0.0
        %2023 = vmatpush1.msra.mxu0 0.0
        %2024 = vmatprep.subr.mxu0 0.0
        %2025 = vmatpush1.msra.mxu0 0.0
        %2026 = vmatprep.subr.mxu0 0.0
        %2027 = vmatpush1.msra.mxu0 0.0
        %2028 = vmatprep.subr.mxu0 0.0
        %2029 = vmatpush1.msra.mxu0 0.0
        %2030 = vmatprep.subr.mxu0 0.0
        %2031 = vmatpush1.msra.mxu0 0.0
        %2032 = vmatprep.subr.mxu0 0.0
        %2033 = vmatpush1.msra.mxu0 0.0
        %2034 = vmatprep.subr.mxu0 0.0
        %2035 = vmatpush1.msra.mxu0 0.0
        %2036 = vmatprep.subr.mxu0 0.0
        %2037 = vmatpush1.msra.mxu0 0.0
        %2038 = vmatprep.subr.mxu0 0.0
        %2039 = vmatpush1.msra.mxu0 0.0
        %2040 = vmatprep.subr.mxu0 0.0
        %2041 = vmatpush1.msra.mxu0 0.0
        %2042 = vmatprep.subr.mxu0 0.0
        %2043 = vmatpush1.msra.mxu0 0.0
        %2044 = vmatprep.subr.mxu0 0.0
        %2045 = vmatpush1.msra.mxu0 0.0
        %2046 = vmatprep.subr.mxu0 0.0
        %2047 = vmatpush1.msra.mxu0 0.0
        %2048 = vmatprep.subr.mxu0 0.0
        %2049 = vmatpush1.msra.mxu0 0.0
        %2050 = vmatprep.subr.mxu0 0.0
        %2051 = vmatpush1.msra.mxu0 0.0
        %2052 = vmatprep.subr.mxu0 0.0
        %2053 = vmatpush1.msra.mxu0 0.0
        %2054 = vmatprep.subr.mxu0 0.0
        %2055 = vmatpush1.msra.mxu0 0.0
        %2056 = vmatprep.subr.mxu0 0.0
        %2057 = vmatpush1.msra.mxu0 0.0
        %2058 = vmatprep.subr.mxu0 0.0
        %2059 = vmatpush1.msra.mxu0 0.0
        %2060 = vmatprep.subr.mxu0 0.0
        %2061 = vmatpush1.msra.mxu0 0.0
        %2062 = vmatprep.subr.mxu0 0.0
        %2063 = vmatpush1.msra.mxu0 0.0
        %2064 = vmatprep.subr.mxu0 0.0
        %2065 = vmatpush1.msra.mxu0 0.0
        %2066 = vmatprep.subr.mxu0 0.0
        %2067 = vmatpush1.msra.mxu0 0.0
        %2068 = vmatprep.subr.mxu0 0.0
        %2069 = vmatpush1.msra.mxu0 0.0
        %2070 = vmatprep.subr.mxu0 0.0
        %2071 = vmatpush1.msra.mxu0 0.0
        %2072 = vmatprep.subr.mxu0 0.0
        %2073 = vmatpush1.msra.mxu0 0.0
        %2074 = vmatprep.subr.mxu0 0.0
        %2075 = vmatpush1.msra.mxu0 0.0
        %2076 = vmatprep.subr.mxu0 0.0
        %2077 = vmatpush1.msra.mxu0 0.0
        %2078 = vmatprep.subr.mxu0 0.0
        %2079 = vmatpush1.msra.mxu0 0.0
        %2080 = vmatprep.mubr.f32.mxu0 0.0
        %2081 = vmatmul.mubr.f32.gmra.mrb[0].mxu0 %v2011
        %v2082 = vpop.f32.mrb[0].mxu0
        %v2083 = vadd.f32 0.0, %v2082
        %v2084 = vpop.f32.mrb[0].mxu0
        %2085 = vmatprep.mubr.f32.mxu0 0.0
        %2086 = vmatmul.mubr.f32.gmra.mrb[0].mxu0 %v2014
        %v2087 = vpop.f32.mrb[0].mxu0
        %v2088 = vadd.f32 0.0, %v2087
        %v2089 = vpop.f32.mrb[0].mxu0
        %2090 = vdwg.mxu0
        %v2092 = vsel %vm311, %v1500, 0
        %v2095 = vsel %vm311, %v1505, 0
        %2097 = vmatprep.subr.mxu0 0.0
        %2098 = vmatpush1.msra.mxu0 %v1838
        %2099 = vmatprep.subr.mxu0 0.0
        %2100 = vmatpush1.msra.mxu0 %v1839
        %2101 = vmatprep.subr.mxu0 0.0
        %2102 = vmatpush1.msra.mxu0 0.0
        %2103 = vmatprep.subr.mxu0 0.0
        %2104 = vmatpush1.msra.mxu0 0.0
        %2105 = vmatprep.subr.mxu0 0.0
        %2106 = vmatpush1.msra.mxu0 0.0
        %2107 = vmatprep.subr.mxu0 0.0
        %2108 = vmatpush1.msra.mxu0 0.0
        %2109 = vmatprep.subr.mxu0 0.0
        %2110 = vmatpush1.msra.mxu0 0.0
        %2111 = vmatprep.subr.mxu0 0.0
        %2112 = vmatpush1.msra.mxu0 0.0
        %2113 = vmatprep.subr.mxu0 0.0
        %2114 = vmatpush1.msra.mxu0 0.0
        %2115 = vmatprep.subr.mxu0 0.0
        %2116 = vmatpush1.msra.mxu0 0.0
        %2117 = vmatprep.subr.mxu0 0.0
        %2118 = vmatpush1.msra.mxu0 0.0
        %2119 = vmatprep.subr.mxu0 0.0
        %2120 = vmatpush1.msra.mxu0 0.0
        %2121 = vmatprep.subr.mxu0 0.0
        %2122 = vmatpush1.msra.mxu0 0.0
        %2123 = vmatprep.subr.mxu0 0.0
        %2124 = vmatpush1.msra.mxu0 0.0
        %2125 = vmatprep.subr.mxu0 0.0
        %2126 = vmatpush1.msra.mxu0 0.0
        %2127 = vmatprep.subr.mxu0 0.0
        %2128 = vmatpush1.msra.mxu0 0.0
        %2129 = vmatprep.subr.mxu0 0.0
        %2130 = vmatpush1.msra.mxu0 0.0
        %2131 = vmatprep.subr.mxu0 0.0
        %2132 = vmatpush1.msra.mxu0 0.0
        %2133 = vmatprep.subr.mxu0 0.0
        %2134 = vmatpush1.msra.mxu0 0.0
        %2135 = vmatprep.subr.mxu0 0.0
        %2136 = vmatpush1.msra.mxu0 0.0
        %2137 = vmatprep.subr.mxu0 0.0
        %2138 = vmatpush1.msra.mxu0 0.0
        %2139 = vmatprep.subr.mxu0 0.0
        %2140 = vmatpush1.msra.mxu0 0.0
        %2141 = vmatprep.subr.mxu0 0.0
        %2142 = vmatpush1.msra.mxu0 0.0
        %2143 = vmatprep.subr.mxu0 0.0
        %2144 = vmatpush1.msra.mxu0 0.0
        %2145 = vmatprep.subr.mxu0 0.0
        %2146 = vmatpush1.msra.mxu0 0.0
        %2147 = vmatprep.subr.mxu0 0.0
        %2148 = vmatpush1.msra.mxu0 0.0
        %2149 = vmatprep.subr.mxu0 0.0
        %2150 = vmatpush1.msra.mxu0 0.0
        %2151 = vmatprep.subr.mxu0 0.0
        %2152 = vmatpush1.msra.mxu0 0.0
        %2153 = vmatprep.subr.mxu0 0.0
        %2154 = vmatpush1.msra.mxu0 0.0
        %2155 = vmatprep.subr.mxu0 0.0
        %2156 = vmatpush1.msra.mxu0 0.0
        %2157 = vmatprep.subr.mxu0 0.0
        %2158 = vmatpush1.msra.mxu0 0.0
        %2159 = vmatprep.subr.mxu0 0.0
        %2160 = vmatpush1.msra.mxu0 0.0
        %2161 = vmatprep.mubr.f32.mxu0 0.0
        %2162 = vmatmul.mubr.f32.gmra.mrb[0].mxu0 %v2092
        %v2163 = vpop.f32.mrb[0].mxu0
        %v2164 = vadd.f32 0.0, %v2163
        %v2165 = vpop.f32.mrb[0].mxu0
        %2166 = vmatprep.mubr.f32.mxu0 0.0
        %2167 = vmatmul.mubr.f32.gmra.mrb[0].mxu0 %v2095
        %v2168 = vpop.f32.mrb[0].mxu0
        %v2169 = vadd.f32 0.0, %v2168
        %v2170 = vpop.f32.mrb[0].mxu0
        %2171 = vdwg.mxu0
        %v2173 = vsel %vm311, %v1581, 0
        %v2176 = vsel %vm311, %v1586, 0
        %2178 = vmatprep.subr.mxu0 0.0
        %2179 = vmatpush1.msra.mxu0 %v1840
        %2180 = vmatprep.subr.mxu0 0.0
        %2181 = vmatpush1.msra.mxu0 %v1841
        %2182 = vmatprep.subr.mxu0 0.0
        %2183 = vmatpush1.msra.mxu0 0.0
        %2184 = vmatprep.subr.mxu0 0.0
        %2185 = vmatpush1.msra.mxu0 0.0
        %2186 = vmatprep.subr.mxu0 0.0
        %2187 = vmatpush1.msra.mxu0 0.0
        %2188 = vmatprep.subr.mxu0 0.0
        %2189 = vmatpush1.msra.mxu0 0.0
        %2190 = vmatprep.subr.mxu0 0.0
        %2191 = vmatpush1.msra.mxu0 0.0
        %2192 = vmatprep.subr.mxu0 0.0
        %2193 = vmatpush1.msra.mxu0 0.0
        %2194 = vmatprep.subr.mxu0 0.0
        %2195 = vmatpush1.msra.mxu0 0.0
        %2196 = vmatprep.subr.mxu0 0.0
        %2197 = vmatpush1.msra.mxu0 0.0
        %2198 = vmatprep.subr.mxu0 0.0
        %2199 = vmatpush1.msra.mxu0 0.0
        %2200 = vmatprep.subr.mxu0 0.0
        %2201 = vmatpush1.msra.mxu0 0.0
        %2202 = vmatprep.subr.mxu0 0.0
        %2203 = vmatpush1.msra.mxu0 0.0
        %2204 = vmatprep.subr.mxu0 0.0
        %2205 = vmatpush1.msra.mxu0 0.0
        %2206 = vmatprep.subr.mxu0 0.0
        %2207 = vmatpush1.msra.mxu0 0.0
        %2208 = vmatprep.subr.mxu0 0.0
        %2209 = vmatpush1.msra.mxu0 0.0
        %2210 = vmatprep.subr.mxu0 0.0
        %2211 = vmatpush1.msra.mxu0 0.0
        %2212 = vmatprep.subr.mxu0 0.0
        %2213 = vmatpush1.msra.mxu0 0.0
        %2214 = vmatprep.subr.mxu0 0.0
        %2215 = vmatpush1.msra.mxu0 0.0
        %2216 = vmatprep.subr.mxu0 0.0
        %2217 = vmatpush1.msra.mxu0 0.0
        %2218 = vmatprep.subr.mxu0 0.0
        %2219 = vmatpush1.msra.mxu0 0.0
        %2220 = vmatprep.subr.mxu0 0.0
        %2221 = vmatpush1.msra.mxu0 0.0
        %2222 = vmatprep.subr.mxu0 0.0
        %2223 = vmatpush1.msra.mxu0 0.0
        %2224 = vmatprep.subr.mxu0 0.0
        %2225 = vmatpush1.msra.mxu0 0.0
        %2226 = vmatprep.subr.mxu0 0.0
        %2227 = vmatpush1.msra.mxu0 0.0
        %2228 = vmatprep.subr.mxu0 0.0
        %2229 = vmatpush1.msra.mxu0 0.0
        %2230 = vmatprep.subr.mxu0 0.0
        %2231 = vmatpush1.msra.mxu0 0.0
        %2232 = vmatprep.subr.mxu0 0.0
        %2233 = vmatpush1.msra.mxu0 0.0
        %2234 = vmatprep.subr.mxu0 0.0
        %2235 = vmatpush1.msra.mxu0 0.0
        %2236 = vmatprep.subr.mxu0 0.0
        %2237 = vmatpush1.msra.mxu0 0.0
        %2238 = vmatprep.subr.mxu0 0.0
        %2239 = vmatpush1.msra.mxu0 0.0
        %2240 = vmatprep.subr.mxu0 0.0
        %2241 = vmatpush1.msra.mxu0 0.0
        %2242 = vmatprep.mubr.f32.mxu0 0.0
        %2243 = vmatmul.mubr.f32.gmra.mrb[0].mxu0 %v2173
        %v2244 = vpop.f32.mrb[0].mxu0
        %v2245 = vadd.f32 0.0, %v2244
        %v2246 = vpop.f32.mrb[0].mxu0
        %2247 = vmatprep.mubr.f32.mxu0 0.0
        %2248 = vmatmul.mubr.f32.gmra.mrb[0].mxu0 %v2176
        %v2249 = vpop.f32.mrb[0].mxu0
        %v2250 = vadd.f32 0.0, %v2249
        %v2251 = vpop.f32.mrb[0].mxu0
        %2252 = vdwg.mxu0
        %v2254 = vsel %vm311, %v1662, 0
        %v2257 = vsel %vm311, %v1667, 0
        %2259 = vmatprep.subr.mxu0 0.0
        %2260 = vmatpush1.msra.mxu0 %v1842
        %2261 = vmatprep.subr.mxu0 0.0
        %2262 = vmatpush1.msra.mxu0 %v1843
        %2263 = vmatprep.subr.mxu0 0.0
        %2264 = vmatpush1.msra.mxu0 0.0
        %2265 = vmatprep.subr.mxu0 0.0
        %2266 = vmatpush1.msra.mxu0 0.0
        %2267 = vmatprep.subr.mxu0 0.0
        %2268 = vmatpush1.msra.mxu0 0.0
        %2269 = vmatprep.subr.mxu0 0.0
        %2270 = vmatpush1.msra.mxu0 0.0
        %2271 = vmatprep.subr.mxu0 0.0
        %2272 = vmatpush1.msra.mxu0 0.0
        %2273 = vmatprep.subr.mxu0 0.0
        %2274 = vmatpush1.msra.mxu0 0.0
        %2275 = vmatprep.subr.mxu0 0.0
        %2276 = vmatpush1.msra.mxu0 0.0
        %2277 = vmatprep.subr.mxu0 0.0
        %2278 = vmatpush1.msra.mxu0 0.0
        %2279 = vmatprep.subr.mxu0 0.0
        %2280 = vmatpush1.msra.mxu0 0.0
        %2281 = vmatprep.subr.mxu0 0.0
        %2282 = vmatpush1.msra.mxu0 0.0
        %2283 = vmatprep.subr.mxu0 0.0
        %2284 = vmatpush1.msra.mxu0 0.0
        %2285 = vmatprep.subr.mxu0 0.0
        %2286 = vmatpush1.msra.mxu0 0.0
        %2287 = vmatprep.subr.mxu0 0.0
        %2288 = vmatpush1.msra.mxu0 0.0
        %2289 = vmatprep.subr.mxu0 0.0
        %2290 = vmatpush1.msra.mxu0 0.0
        %2291 = vmatprep.subr.mxu0 0.0
        %2292 = vmatpush1.msra.mxu0 0.0
        %2293 = vmatprep.subr.mxu0 0.0
        %2294 = vmatpush1.msra.mxu0 0.0
        %2295 = vmatprep.subr.mxu0 0.0
        %2296 = vmatpush1.msra.mxu0 0.0
        %2297 = vmatprep.subr.mxu0 0.0
        %2298 = vmatpush1.msra.mxu0 0.0
        %2299 = vmatprep.subr.mxu0 0.0
        %2300 = vmatpush1.msra.mxu0 0.0
        %2301 = vmatprep.subr.mxu0 0.0
        %2302 = vmatpush1.msra.mxu0 0.0
        %2303 = vmatprep.subr.mxu0 0.0
        %2304 = vmatpush1.msra.mxu0 0.0
        %2305 = vmatprep.subr.mxu0 0.0
        %2306 = vmatpush1.msra.mxu0 0.0
        %2307 = vmatprep.subr.mxu0 0.0
        %2308 = vmatpush1.msra.mxu0 0.0
        %2309 = vmatprep.subr.mxu0 0.0
        %2310 = vmatpush1.msra.mxu0 0.0
        %2311 = vmatprep.subr.mxu0 0.0
        %2312 = vmatpush1.msra.mxu0 0.0
        %2313 = vmatprep.subr.mxu0 0.0
        %2314 = vmatpush1.msra.mxu0 0.0
        %2315 = vmatprep.subr.mxu0 0.0
        %2316 = vmatpush1.msra.mxu0 0.0
        %2317 = vmatprep.subr.mxu0 0.0
        %2318 = vmatpush1.msra.mxu0 0.0
        %2319 = vmatprep.subr.mxu0 0.0
        %2320 = vmatpush1.msra.mxu0 0.0
        %2321 = vmatprep.subr.mxu0 0.0
        %2322 = vmatpush1.msra.mxu0 0.0
        %2323 = vmatprep.mubr.f32.mxu0 0.0
        %2324 = vmatmul.mubr.f32.gmra.mrb[0].mxu0 %v2254
        %v2325 = vpop.f32.mrb[0].mxu0
        %v2326 = vadd.f32 0.0, %v2325
        %v2327 = vpop.f32.mrb[0].mxu0
        %2328 = vmatprep.mubr.f32.mxu0 0.0
        %2329 = vmatmul.mubr.f32.gmra.mrb[0].mxu0 %v2257
        %v2330 = vpop.f32.mrb[0].mxu0
        %v2331 = vadd.f32 0.0, %v2330
        %v2332 = vpop.f32.mrb[0].mxu0
        %2333 = vdwg.mxu0
        %v2335 = vsel %vm311, %v1743, 0
        %v2338 = vsel %vm311, %v1748, 0
        %2340 = vmatprep.subr.mxu0 0.0
        %2341 = vmatpush1.msra.mxu0 %v1844
        %2342 = vmatprep.subr.mxu0 0.0
        %2343 = vmatpush1.msra.mxu0 %v1845
        %2344 = vmatprep.subr.mxu0 0.0
        %2345 = vmatpush1.msra.mxu0 0.0
        %2346 = vmatprep.subr.mxu0 0.0
        %2347 = vmatpush1.msra.mxu0 0.0
        %2348 = vmatprep.subr.mxu0 0.0
        %2349 = vmatpush1.msra.mxu0 0.0
        %2350 = vmatprep.subr.mxu0 0.0
        %2351 = vmatpush1.msra.mxu0 0.0
        %2352 = vmatprep.subr.mxu0 0.0
        %2353 = vmatpush1.msra.mxu0 0.0
        %2354 = vmatprep.subr.mxu0 0.0
        %2355 = vmatpush1.msra.mxu0 0.0
        %2356 = vmatprep.subr.mxu0 0.0
        %2357 = vmatpush1.msra.mxu0 0.0
        %2358 = vmatprep.subr.mxu0 0.0
        %2359 = vmatpush1.msra.mxu0 0.0
        %2360 = vmatprep.subr.mxu0 0.0
        %2361 = vmatpush1.msra.mxu0 0.0
        %2362 = vmatprep.subr.mxu0 0.0
        %2363 = vmatpush1.msra.mxu0 0.0
        %2364 = vmatprep.subr.mxu0 0.0
        %2365 = vmatpush1.msra.mxu0 0.0
        %2366 = vmatprep.subr.mxu0 0.0
        %2367 = vmatpush1.msra.mxu0 0.0
        %2368 = vmatprep.subr.mxu0 0.0
        %2369 = vmatpush1.msra.mxu0 0.0
        %2370 = vmatprep.subr.mxu0 0.0
        %2371 = vmatpush1.msra.mxu0 0.0
        %2372 = vmatprep.subr.mxu0 0.0
        %2373 = vmatpush1.msra.mxu0 0.0
        %2374 = vmatprep.subr.mxu0 0.0
        %2375 = vmatpush1.msra.mxu0 0.0
        %2376 = vmatprep.subr.mxu0 0.0
        %2377 = vmatpush1.msra.mxu0 0.0
        %2378 = vmatprep.subr.mxu0 0.0
        %2379 = vmatpush1.msra.mxu0 0.0
        %2380 = vmatprep.subr.mxu0 0.0
        %2381 = vmatpush1.msra.mxu0 0.0
        %2382 = vmatprep.subr.mxu0 0.0
        %2383 = vmatpush1.msra.mxu0 0.0
        %2384 = vmatprep.subr.mxu0 0.0
        %2385 = vmatpush1.msra.mxu0 0.0
        %2386 = vmatprep.subr.mxu0 0.0
        %2387 = vmatpush1.msra.mxu0 0.0
        %2388 = vmatprep.subr.mxu0 0.0
        %2389 = vmatpush1.msra.mxu0 0.0
        %2390 = vmatprep.subr.mxu0 0.0
        %2391 = vmatpush1.msra.mxu0 0.0
        %2392 = vmatprep.subr.mxu0 0.0
        %2393 = vmatpush1.msra.mxu0 0.0
        %2394 = vmatprep.subr.mxu0 0.0
        %2395 = vmatpush1.msra.mxu0 0.0
        %2396 = vmatprep.subr.mxu0 0.0
        %2397 = vmatpush1.msra.mxu0 0.0
        %2398 = vmatprep.subr.mxu0 0.0
        %2399 = vmatpush1.msra.mxu0 0.0
        %2400 = vmatprep.subr.mxu0 0.0
        %2401 = vmatpush1.msra.mxu0 0.0
        %2402 = vmatprep.subr.mxu0 0.0
        %2403 = vmatpush1.msra.mxu0 0.0
        %2404 = vmatprep.mubr.f32.mxu0 0.0
        %2405 = vmatmul.mubr.f32.gmra.mrb[0].mxu0 %v2335
        %v2406 = vpop.f32.mrb[0].mxu0
        %v2407 = vadd.f32 0.0, %v2406
        %v2408 = vpop.f32.mrb[0].mxu0
        %2409 = vmatprep.mubr.f32.mxu0 0.0
        %2410 = vmatmul.mubr.f32.gmra.mrb[0].mxu0 %v2338
        %v2411 = vpop.f32.mrb[0].mxu0
        %v2412 = vadd.f32 0.0, %v2411
        %v2413 = vpop.f32.mrb[0].mxu0
        %2414 = vdwg.mxu0
        %v2416 = vsel %vm311, %v1824, 0
        %v2419 = vsel %vm311, %v1829, 0
        %2421 = vmatprep.subr.mxu0 0.0
        %2422 = vmatpush1.msra.mxu0 %v1846
        %2423 = vmatprep.subr.mxu0 0.0
        %2424 = vmatpush1.msra.mxu0 %v1847
        %2425 = vmatprep.subr.mxu0 0.0
        %2426 = vmatpush1.msra.mxu0 0.0
        %2427 = vmatprep.subr.mxu0 0.0
        %2428 = vmatpush1.msra.mxu0 0.0
        %2429 = vmatprep.subr.mxu0 0.0
        %2430 = vmatpush1.msra.mxu0 0.0
        %2431 = vmatprep.subr.mxu0 0.0
        %2432 = vmatpush1.msra.mxu0 0.0
        %2433 = vmatprep.subr.mxu0 0.0
        %2434 = vmatpush1.msra.mxu0 0.0
        %2435 = vmatprep.subr.mxu0 0.0
        %2436 = vmatpush1.msra.mxu0 0.0
        %2437 = vmatprep.subr.mxu0 0.0
        %2438 = vmatpush1.msra.mxu0 0.0
        %2439 = vmatprep.subr.mxu0 0.0
        %2440 = vmatpush1.msra.mxu0 0.0
        %2441 = vmatprep.subr.mxu0 0.0
        %2442 = vmatpush1.msra.mxu0 0.0
        %2443 = vmatprep.subr.mxu0 0.0
        %2444 = vmatpush1.msra.mxu0 0.0
        %2445 = vmatprep.subr.mxu0 0.0
        %2446 = vmatpush1.msra.mxu0 0.0
        %2447 = vmatprep.subr.mxu0 0.0
        %2448 = vmatpush1.msra.mxu0 0.0
        %2449 = vmatprep.subr.mxu0 0.0
        %2450 = vmatpush1.msra.mxu0 0.0
        %2451 = vmatprep.subr.mxu0 0.0
        %2452 = vmatpush1.msra.mxu0 0.0
        %2453 = vmatprep.subr.mxu0 0.0
        %2454 = vmatpush1.msra.mxu0 0.0
        %2455 = vmatprep.subr.mxu0 0.0
        %2456 = vmatpush1.msra.mxu0 0.0
        %2457 = vmatprep.subr.mxu0 0.0
        %2458 = vmatpush1.msra.mxu0 0.0
        %2459 = vmatprep.subr.mxu0 0.0
        %2460 = vmatpush1.msra.mxu0 0.0
        %2461 = vmatprep.subr.mxu0 0.0
        %2462 = vmatpush1.msra.mxu0 0.0
        %2463 = vmatprep.subr.mxu0 0.0
        %2464 = vmatpush1.msra.mxu0 0.0
        %2465 = vmatprep.subr.mxu0 0.0
        %2466 = vmatpush1.msra.mxu0 0.0
        %2467 = vmatprep.subr.mxu0 0.0
        %2468 = vmatpush1.msra.mxu0 0.0
        %2469 = vmatprep.subr.mxu0 0.0
        %2470 = vmatpush1.msra.mxu0 0.0
        %2471 = vmatprep.subr.mxu0 0.0
        %2472 = vmatpush1.msra.mxu0 0.0
        %2473 = vmatprep.subr.mxu0 0.0
        %2474 = vmatpush1.msra.mxu0 0.0
        %2475 = vmatprep.subr.mxu0 0.0
        %2476 = vmatpush1.msra.mxu0 0.0
        %2477 = vmatprep.subr.mxu0 0.0
        %2478 = vmatpush1.msra.mxu0 0.0
        %2479 = vmatprep.subr.mxu0 0.0
        %2480 = vmatpush1.msra.mxu0 0.0
        %2481 = vmatprep.subr.mxu0 0.0
        %2482 = vmatpush1.msra.mxu0 0.0
        %2483 = vmatprep.subr.mxu0 0.0
        %2484 = vmatpush1.msra.mxu0 0.0
        %2485 = vmatprep.mubr.f32.mxu0 0.0
        %2486 = vmatmul.mubr.f32.gmra.mrb[0].mxu0 %v2416
        %v2487 = vpop.f32.mrb[0].mxu0
        %v2488 = vadd.f32 0.0, %v2487
        %v2489 = vpop.f32.mrb[0].mxu0
        %2490 = vmatprep.mubr.f32.mxu0 0.0
        %2491 = vmatmul.mubr.f32.gmra.mrb[0].mxu0 %v2419
        %v2492 = vpop.f32.mrb[0].mxu0
        %v2493 = vadd.f32 0.0, %v2492
        %v2494 = vpop.f32.mrb[0].mxu0
        %2495 = vdwg.mxu0
        %v2496 = vadd.f32 %v1921, %v2002
        %v2497 = vadd.f32 %v2496, %v2083
        %v2498 = vadd.f32 %v2497, %v2164
        %v2499 = vadd.f32 %v2498, %v2245
        %v2500 = vadd.f32 %v2499, %v2326
        %v2501 = vadd.f32 %v2500, %v2407
        %v2502 = vadd.f32 %v2501, %v2488
        %v2503 = vadd.f32 %v1926, %v2007
        %v2504 = vadd.f32 %v2503, %v2088
        %v2505 = vadd.f32 %v2504, %v2169
        %v2506 = vadd.f32 %v2505, %v2250
        %v2507 = vadd.f32 %v2506, %v2331
        %v2508 = vadd.f32 %v2507, %v2412
        %v2509 = vadd.f32 %v2508, %v2493
        %v2510 = vld [vmem:[%s4] sm:$0x1]
        %v2512 = vlaneseq
        %v2513 = vshrl.u32 %v2512, 7
        %v2514 = vsub.s32 0, %v2513
        %v2515 = vrot.slane %v2510, %v2514
        %v2517 = vadd.f32 %v2502, %v2515
        %v2518 = vadd.f32 %v2509, %v2515
        %2519 = vst [vmem:[%s247] sm:$0xff] %v2517
        %2520 = vst [vmem:[%s247 + $0x8] sm:$0xff] %v2518
        %s2521 = sand.u32 %s147, 1
        %s2522 = scalar_lea.sflag [#allocation3], %s2521
        %s2523 = sand.u32 %s147, 1
        %s2524 = smul.addr %s2523, 16
        %s2525 = scalar_lea.vmem [#allocation2], %s2524
        // Predicated region
        $region41: #{attention_pallas.3} parent=39 // pred_check
          %p2526 = pneg %p157
        $region42: #{attention_pallas.3} parent=39 // pred_check_branch
          %2528 = sbr.rel (%p2526) target = $region44
        $region43: #{attention_pallas.3} parent=39 // pred_region
          %s2530 = ssub.s32 256, 256
          %2531 = vsyncadd %s2522, %s2530
          %s2532 = smul.addr %s19, 2
          %s2533 = smul.addr %s2532, 128
          %s2534 = scalar_lea.hbm %s5, %s2533
          %s2535 = sshll.u32 %s2525, 4
          %s2536 = int_to_ptr.vmem [resolvable:$true] %s2535
          %2541 = dma.vmem_to_hbm [thread:$0]  %s2536, 256, %s2534, %s2522, 128, 128, 8
        $region44: #{attention_pallas.3} parent=39 // pred_fallthru
          _
      $region40: #{attention_pallas.3} parent=5 // pred_fallthru
        _
      %p2542 = scmp.le.s32.totalorder 2, %s14
      // Predicated region
      $region45: #{attention_pallas.3} parent=5 // pred_check
        %p2543 = pneg %p2542
      $region46: #{attention_pallas.3} parent=5 // pred_check_branch
        %2545 = sbr.rel (%p2543) target = $region48
      $region47: #{attention_pallas.3} parent=5 // pred_region
        %s2546 = ssub.s32 %s14, 2
        // Predicated region
        $region49: #{attention_pallas.3} parent=47 // pred_check
          %p2547 = pneg %p163
        $region50: #{attention_pallas.3} parent=47 // pred_check_branch
          %2549 = sbr.rel (%p2547) target = $region52
        $region51: #{attention_pallas.3} parent=47 // pred_region
          %s2550 = sand.u32 %s148, 1
          %s2551 = scalar_lea.sflag [#allocation3], %s2550
          %s2552 = sand.u32 %s148, 1
          %s2553 = smul.addr %s2552, 16
          %s2554 = scalar_lea.vmem [#allocation2], %s2553
          %2555 = dma.done %s2551, 256
        $region52: #{attention_pallas.3} parent=47 // pred_fallthru
          _
      $region48: #{attention_pallas.3} parent=5 // pred_fallthru
        _
    $region6: #{attention_pallas.3} parent=1 // loop_footer
      %s18 = sadd.s32 1, %s14
    $region7: #{attention_pallas.3} parent=1 // loop_footer_branch
      %13 = sbr.rel target = $region3
    $region8: #{attention_pallas.3} parent=1 // loop_exit
      _
    %2556 = vsyncpa [#allocation3], 1
    %s2557 = scalar_lea.sflag [#allocation3], 1
    %2558 = vsyncpa %s2557, 1

</llo_original>
